<compile_context>
chip_gen: v5e
topology: v5e:2x2
jax: 0.10.0
libtpu: 0.0.40
codegen_flags: <defaults>
</compile_context>

<pallas_src>
import math
from functools import partial

import jax
import jax.numpy as jnp
from jax.experimental import pallas as pl
from jax.experimental.pallas import tpu as pltpu

DTYPE = jnp.bfloat16

# bf16 x bf16 -> f32 dots are MXU-native on real TPUs but are rejected by the
# CPU dot executor used under TPU-interpret mode, so pick the matmul operand
# dtype per backend (f32 accumulation either way).
_DOT_IN_DTYPE = jnp.bfloat16 if jax.default_backend() == "tpu" else jnp.float32

# Keep the scoped-VMEM request valid on every generation (v7x has only 64 MiB
# physical VMEM per TensorCore; v5e/v6e have 128 MiB).
_VMEM_LIMIT_BYTES = 48 * 1024 * 1024


def _pick_tile(dim, candidates):
    """Largest candidate tile that evenly divides `dim`, else the full dim."""
    for c in candidates:
        if dim >= c and dim % c == 0:
            return c
    return dim


def _mm(a, b, dimension_numbers=None):
    """Matmul with f32 accumulation; operand dtype chosen per backend."""
    a = a.astype(_DOT_IN_DTYPE)
    b = b.astype(_DOT_IN_DTYPE)
    if dimension_numbers is None:
        dimension_numbers = (((a.ndim - 1,), (0,)), ((), ()))
    return jax.lax.dot_general(a, b, dimension_numbers,
                               preferred_element_type=jnp.float32)


def _rms_norm(x, g, eps=1e-6):
    """RMSNorm: reductions in f32, result back in bf16 (residual stays bf16)."""
    xf = x.astype(jnp.float32)
    var = jnp.mean(xf * xf, axis=-1, keepdims=True)
    return (xf * jax.lax.rsqrt(var + eps) * g.astype(jnp.float32)).astype(DTYPE)


def _causal_attention(q, f_k, f_v, mask_row, kv_chunk):
    """KV-chunked online-softmax attention; never materializes full (S, S).

    q/f_k/f_v: (S, H) float32; mask_row: (1, S) int32 key mask.
    """
    S, H = q.shape
    scale = 1.0 / math.sqrt(H)
    m_i = jnp.full((S, 1), -jnp.inf, jnp.float32)
    l_i = jnp.zeros((S, 1), jnp.float32)
    acc = jnp.zeros((S, H), jnp.float32)
    row = jax.lax.broadcasted_iota(jnp.int32, (S, kv_chunk), 0)
    col = jax.lax.broadcasted_iota(jnp.int32, (S, kv_chunk), 1)
    for c in range(S // kv_chunk):           # static chunk loop (no k.T anywhere)
        start = c * kv_chunk
        k_c = f_k[start:start + kv_chunk]                      # (TK, H)
        v_c = f_v[start:start + kv_chunk]                      # (TK, H)
        msk = mask_row[:, start:start + kv_chunk]              # (1, TK)
        # q @ k_c^T via dot_general contracting H on both sides (no transpose).
        s = _mm(q, k_c, (((1,), (1,)), ((), ()))) * scale      # (S, TK) f32
        keep = ((col + start) <= row) & (msk > 0)
        s = jnp.where(keep, s, -1e30)
        m_new = jnp.maximum(m_i, jnp.max(s, axis=-1, keepdims=True))
        alpha = jnp.exp(m_i - m_new)
        p = jnp.exp(s - m_new)
        l_i = alpha * l_i + jnp.sum(p, axis=-1, keepdims=True)
        acc = alpha * acc + _mm(p, v_c)
        m_i = m_new
    # NOTE: fully-masked query rows get a uniform distribution (no NaN); they
    # are expected to be masked downstream, matching the original behavior.
    return acc / l_i


# ---------------------------------------------------------------------------
# Kernel A: synthetic base-transformer block (one batch row per grid step)
# ---------------------------------------------------------------------------
def base_block_kernel(x_ref, mask_ref, wq_ref, wk_ref, wv_ref, wo_ref,
                      w1_ref, w2_ref, g1_ref, g2_ref, gf_ref, o_ref,
                      *, kv_chunk):
    x = x_ref[0]                              # (S, H) bf16 residual stream
    mask_row = mask_ref[0]                    # (1, S) int32

    # --- causal self-attention (single head) ---
    h = _rms_norm(x, g1_ref[...])                                   # bf16
    q = _mm(h, wq_ref[...])                                         # (S, H) f32
    k = _mm(h, wk_ref[...])
    v = _mm(h, wv_ref[...])
    attn = _causal_attention(q, k, v, mask_row, kv_chunk)           # (S, H) f32
    attn = _mm(attn.astype(DTYPE), wo_ref[...])
    x = (x.astype(jnp.float32) + attn).astype(DTYPE)

    # --- MLP ---
    h = _rms_norm(x, g2_ref[...])
    u = _mm(h, w1_ref[...])                                         # (S, F) f32
    u = jax.nn.gelu(u, approximate=True).astype(DTYPE)
    m = _mm(u, w2_ref[...])
    x = (x.astype(jnp.float32) + m).astype(DTYPE)

    # --- final norm ---
    o_ref[...] = _rms_norm(x, gf_ref[...])[None].astype(o_ref.dtype)


def base_transformer(h0, mask, p):
    B, S, H = h0.shape
    F = p["w1"].shape[1]
    kv_chunk = _pick_tile(S, (512, 256, 128))
    # TODO(synk): at production H/F/S this needs a sequence-tile grid axis and
    # K/N-tiled weights with a resident f32 accumulator; at toy sizes the whole
    # per-batch tile fits VMEM on every generation.
    return pl.pallas_call(
        partial(base_block_kernel, kv_chunk=kv_chunk),
        out_shape=jax.ShapeDtypeStruct((B, S, H), DTYPE),
        grid=(B,),
        in_specs=[
            pl.BlockSpec((1, S, H), lambda b: (b, 0, 0)),   # hidden in
            pl.BlockSpec((1, 1, S), lambda b: (b, 0, 0)),   # attention mask
            pl.BlockSpec((H, H), lambda b: (0, 0)),         # wq (grid-invariant)
            pl.BlockSpec((H, H), lambda b: (0, 0)),         # wk
            pl.BlockSpec((H, H), lambda b: (0, 0)),         # wv
            pl.BlockSpec((H, H), lambda b: (0, 0)),         # wo
            pl.BlockSpec((H, F), lambda b: (0, 0)),         # mlp up
            pl.BlockSpec((F, H), lambda b: (0, 0)),         # mlp down
            pl.BlockSpec((1, H), lambda b: (0, 0)),         # norm 1 gamma
            pl.BlockSpec((1, H), lambda b: (0, 0)),         # norm 2 gamma
            pl.BlockSpec((1, H), lambda b: (0, 0)),         # final norm gamma
        ],
        out_specs=pl.BlockSpec((1, S, H), lambda b: (b, 0, 0)),
        compiler_params=pltpu.CompilerParams(
            dimension_semantics=("parallel",),
            vmem_limit_bytes=_VMEM_LIMIT_BYTES),
    )(h0, mask, p["wq"], p["wk"], p["wv"], p["wo"], p["w1"], p["w2"],
      p["g1"], p["g2"], p["gf"])


# ---------------------------------------------------------------------------
# Kernel B: multi-head LM projection  ->  stack([head(h) for head in heads], 0)
# B*S folded into M (fills the MXU); vocab tiled so the weight stream stays
# small and output stores are lane-dense. Grid order (head, M, V) keeps the
# hidden tile resident across the whole V sweep (its block index is constant).
# ---------------------------------------------------------------------------
def mh_head_kernel(h_ref, w_ref, b_ref, o_ref):
    acc = _mm(h_ref[...], w_ref[0]) + b_ref[0].astype(jnp.float32)  # (TM, TV)
    o_ref[...] = acc[None].astype(o_ref.dtype)                      # (1, TM, TV)


def multi_head_project(hidden, head_w, head_b):
    B, S, H = hidden.shape
    NH, _, V = head_w.shape
    M = B * S
    h2 = hidden.reshape(M, H)
    TM = _pick_tile(M, (256, 128))          # 256-multiples for v6e/v7x MXU
    TV = _pick_tile(V, (512, 256, 128))
    out = pl.pallas_call(
        mh_head_kernel,
        out_shape=jax.ShapeDtypeStruct((NH, M, V), DTYPE),
        grid=(NH, M // TM, V // TV),
        in_specs=[
            pl.BlockSpec((TM, H), lambda hd, m, v: (m, 0)),
            pl.BlockSpec((1, H, TV), lambda hd, m, v: (hd, 0, v)),
            pl.BlockSpec((1, 1, TV), lambda hd, m, v: (hd, 0, v)),
        ],
        out_specs=pl.BlockSpec((1, TM, TV), lambda hd, m, v: (hd, m, v)),
        compiler_params=pltpu.CompilerParams(
            dimension_semantics=("parallel", "parallel", "parallel"),
            vmem_limit_bytes=_VMEM_LIMIT_BYTES),
    )(h2, head_w, head_b)
    return out.reshape(NH, B, S, V)


# ---------------------------------------------------------------------------
# Parameter init (deterministic, synthetic)
# ---------------------------------------------------------------------------
def init_params(key, *, vocab, hidden, ffn, num_heads):
    ks = jax.random.split(key, 9)

    def n(k, shape, scale=0.02):
        return (scale * jax.random.normal(k, shape, dtype=jnp.float32)).astype(DTYPE)

    p = {
        "embed": n(ks[0], (vocab, hidden)),
        "wq": n(ks[1], (hidden, hidden)),
        "wk": n(ks[2], (hidden, hidden)),
        "wv": n(ks[3], (hidden, hidden)),
        "wo": n(ks[4], (hidden, hidden)),
        "w1": n(ks[5], (hidden, ffn)),
        "w2": n(ks[6], (ffn, hidden)),
        "g1": jnp.ones((1, hidden), DTYPE),
        "g2": jnp.ones((1, hidden), DTYPE),
        "gf": jnp.ones((1, hidden), DTYPE),
    }
    # lm_head weights: like the PyTorch module, every head is initialized with
    # a *copy* of the base lm_head weight / bias (kept as distinct per-head
    # parameters so the layout matches the nn.ModuleList of Linears).
    base_w = n(ks[7], (vocab, hidden))           # torch Linear weight (V, H)
    base_b = n(ks[8], (vocab,))
    p["head_w"] = jnp.tile(base_w.T[None], (num_heads, 1, 1))         # (NH,H,V)
    p["head_b"] = jnp.tile(base_b[None, None, :], (num_heads, 1, 1))  # (NH,1,V)
    return p


@jax.jit
def multi_head_causal_lm_forward(params, input_ids, attention_mask):
    B, S = input_ids.shape
    h0 = jnp.take(params["embed"], input_ids, axis=0)         # (B,S,H) bf16
    mask = attention_mask.astype(jnp.int32).reshape(B, 1, S)
    hidden = base_transformer(h0, mask, params)                # last_hidden_state
    return multi_head_project(hidden, params["head_w"], params["head_b"])


if __name__ == "__main__":
    VOCAB, HIDDEN, FFN, NUM_HEADS = 128, 32, 128, 2
    B, S = 2, 8

    key = jax.random.PRNGKey(0)
    pkey, dkey = jax.random.split(key)
    params = init_params(pkey, vocab=VOCAB, hidden=HIDDEN, ffn=FFN,
                         num_heads=NUM_HEADS)
    input_ids = jax.random.randint(dkey, (B, S), 0, VOCAB, dtype=jnp.int32)
    attention_mask = jnp.ones((B, S), dtype=jnp.int32)

    logits = multi_head_causal_lm_forward(params, input_ids, attention_mask)
    logits = jax.block_until_ready(logits)

    assert logits.shape == (NUM_HEADS, B, S, VOCAB), logits.shape
    assert logits.dtype == DTYPE, logits.dtype
    assert bool(jnp.all(jnp.isfinite(logits.astype(jnp.float32)))), "non-finite logits"
    print("KERNEL_OK")
</pallas_src>

<mosaic_0001>
module attributes {stable_mosaic.version = 11 : i64} {
  func.func @base_block_kernel(%arg0: i32, %arg1: memref<1x8x32xbf16, #tpu.memory_space<vmem>>, %arg2: memref<1x1x8xi32, #tpu.memory_space<vmem>>, %arg3: memref<32x32xbf16, #tpu.memory_space<vmem>>, %arg4: memref<32x32xbf16, #tpu.memory_space<vmem>>, %arg5: memref<32x32xbf16, #tpu.memory_space<vmem>>, %arg6: memref<32x32xbf16, #tpu.memory_space<vmem>>, %arg7: memref<32x128xbf16, #tpu.memory_space<vmem>>, %arg8: memref<128x32xbf16, #tpu.memory_space<vmem>>, %arg9: memref<1x32xbf16, #tpu.memory_space<vmem>>, %arg10: memref<1x32xbf16, #tpu.memory_space<vmem>>, %arg11: memref<1x32xbf16, #tpu.memory_space<vmem>>, %arg12: memref<1x8x32xbf16, #tpu.memory_space<vmem>>) attributes {dimension_semantics = [#tpu.dimension_semantics<parallel>], iteration_bounds = array<i64: 2>, scalar_prefetch = 0 : i64, scratch_operands = 0 : i64, tpu.core_type = #tpu.core_type<tc>, window_params = [{transform_indices = @transform_0, window_bounds = array<i64: 1, 8, 32>}, {transform_indices = @transform_1, window_bounds = array<i64: 1, 1, 8>}, {pipeline_mode = #tpu.pipeline_mode<synchronous>, transform_indices = @transform_2, window_bounds = array<i64: 32, 32>}, {pipeline_mode = #tpu.pipeline_mode<synchronous>, transform_indices = @transform_3, window_bounds = array<i64: 32, 32>}, {pipeline_mode = #tpu.pipeline_mode<synchronous>, transform_indices = @transform_4, window_bounds = array<i64: 32, 32>}, {pipeline_mode = #tpu.pipeline_mode<synchronous>, transform_indices = @transform_5, window_bounds = array<i64: 32, 32>}, {pipeline_mode = #tpu.pipeline_mode<synchronous>, transform_indices = @transform_6, window_bounds = array<i64: 32, 128>}, {pipeline_mode = #tpu.pipeline_mode<synchronous>, transform_indices = @transform_7, window_bounds = array<i64: 128, 32>}, {pipeline_mode = #tpu.pipeline_mode<synchronous>, transform_indices = @transform_8, window_bounds = array<i64: 1, 32>}, {pipeline_mode = #tpu.pipeline_mode<synchronous>, transform_indices = @transform_9, window_bounds = array<i64: 1, 32>}, {pipeline_mode = #tpu.pipeline_mode<synchronous>, transform_indices = @transform_10, window_bounds = array<i64: 1, 32>}, {transform_indices = @transform_11, window_bounds = array<i64: 1, 8, 32>}]} {
    %c0 = arith.constant 0 : index
    %c0_0 = arith.constant 0 : index
    %c0_1 = arith.constant 0 : index
    %0 = vector.load %arg1[%c0, %c0_0, %c0_1] : memref<1x8x32xbf16, #tpu.memory_space<vmem>>, vector<1x8x32xbf16>
    %1 = vector.shape_cast %0 : vector<1x8x32xbf16> to vector<8x32xbf16>
    %c0_2 = arith.constant 0 : index
    %c0_3 = arith.constant 0 : index
    %c0_4 = arith.constant 0 : index
    %2 = vector.load %arg2[%c0_2, %c0_3, %c0_4] : memref<1x1x8xi32, #tpu.memory_space<vmem>>, vector<1x1x8xi32>
    %3 = vector.shape_cast %2 : vector<1x1x8xi32> to vector<1x8xi32>
    %c0_5 = arith.constant 0 : index
    %c0_6 = arith.constant 0 : index
    %4 = vector.load %arg9[%c0_5, %c0_6] : memref<1x32xbf16, #tpu.memory_space<vmem>>, vector<1x32xbf16>
    %5 = arith.extf %1 : vector<8x32xbf16> to vector<8x32xf32>
    %6 = arith.mulf %5, %5 : vector<8x32xf32>
    %cst = arith.constant dense<0.000000e+00> : vector<8xf32>
    %7 = vector.multi_reduction <add>, %6, %cst [1] : vector<8x32xf32> to vector<8xf32>
    %8 = vector.shape_cast %7 : vector<8xf32> to vector<8x1xf32>
    %cst_7 = arith.constant 3.200000e+01 : f32
    %9 = vector.broadcast %cst_7 : f32 to vector<8x1xf32>
    %10 = arith.divf %8, %9 : vector<8x1xf32>
    %cst_8 = arith.constant 9.99999997E-7 : f32
    %11 = vector.broadcast %cst_8 : f32 to vector<8x1xf32>
    %12 = arith.addf %10, %11 : vector<8x1xf32>
    %13 = math.rsqrt %12 : vector<8x1xf32>
    %14 = vector.broadcast %13 : vector<8x1xf32> to vector<8x32xf32>
    %15 = arith.mulf %5, %14 : vector<8x32xf32>
    %16 = arith.extf %4 : vector<1x32xbf16> to vector<1x32xf32>
    %17 = vector.broadcast %16 : vector<1x32xf32> to vector<8x32xf32>
    %18 = arith.mulf %15, %17 : vector<8x32xf32>
    %19 = arith.truncf %18 : vector<8x32xf32> to vector<8x32xbf16>
    %c0_9 = arith.constant 0 : index
    %c0_10 = arith.constant 0 : index
    %20 = vector.load %arg3[%c0_9, %c0_10] : memref<32x32xbf16, #tpu.memory_space<vmem>>, vector<32x32xbf16>
    %21 = arith.extf %19 : vector<8x32xbf16> to vector<8x32xf32>
    %22 = arith.extf %20 : vector<32x32xbf16> to vector<32x32xf32>
    %cst_11 = arith.constant dense<0.000000e+00> : vector<8x32xf32>
    %23 = tpu.matmul %21, %22, %cst_11 {dimension_numbers = #tpu.dot_dimension_numbers<[1], [0], [0], [1], [0, 0, 1, 1], [], []>} : vector<8x32xf32>, vector<32x32xf32>, vector<8x32xf32> -> vector<8x32xf32>
    %c0_12 = arith.constant 0 : index
    %c0_13 = arith.constant 0 : index
    %24 = vector.load %arg4[%c0_12, %c0_13] : memref<32x32xbf16, #tpu.memory_space<vmem>>, vector<32x32xbf16>
    %25 = arith.extf %19 : vector<8x32xbf16> to vector<8x32xf32>
    %26 = arith.extf %24 : vector<32x32xbf16> to vector<32x32xf32>
    %cst_14 = arith.constant dense<0.000000e+00> : vector<8x32xf32>
    %27 = tpu.matmul %25, %26, %cst_14 {dimension_numbers = #tpu.dot_dimension_numbers<[1], [0], [0], [1], [0, 0, 1, 1], [], []>} : vector<8x32xf32>, vector<32x32xf32>, vector<8x32xf32> -> vector<8x32xf32>
    %c0_15 = arith.constant 0 : index
    %c0_16 = arith.constant 0 : index
    %28 = vector.load %arg5[%c0_15, %c0_16] : memref<32x32xbf16, #tpu.memory_space<vmem>>, vector<32x32xbf16>
    %29 = arith.extf %19 : vector<8x32xbf16> to vector<8x32xf32>
    %30 = arith.extf %28 : vector<32x32xbf16> to vector<32x32xf32>
    %cst_17 = arith.constant dense<0.000000e+00> : vector<8x32xf32>
    %31 = tpu.matmul %29, %30, %cst_17 {dimension_numbers = #tpu.dot_dimension_numbers<[1], [0], [0], [1], [0, 0, 1, 1], [], []>} : vector<8x32xf32>, vector<32x32xf32>, vector<8x32xf32> -> vector<8x32xf32>
    %cst_18 = arith.constant 0xFF800000 : f32
    %32 = vector.broadcast %cst_18 : f32 to vector<8x1xf32>
    %cst_19 = arith.constant 0.000000e+00 : f32
    %33 = vector.broadcast %cst_19 : f32 to vector<8x1xf32>
    %cst_20 = arith.constant 0.000000e+00 : f32
    %34 = vector.broadcast %cst_20 : f32 to vector<8x32xf32>
    %35 = tpu.iota {dimensions = array<i32: 0>} : vector<8x8xi32>
    %36 = tpu.iota {dimensions = array<i32: 1>} : vector<8x8xi32>
    %cst_21 = arith.constant dense<0.000000e+00> : vector<8x8xf32>
    %37 = tpu.matmul %23, %27, %cst_21 {dimension_numbers = #tpu.dot_dimension_numbers<[1], [1], [0], [0], [0, 0, 1, 0], [], []>} : vector<8x32xf32>, vector<8x32xf32>, vector<8x8xf32> -> vector<8x8xf32>
    %cst_22 = arith.constant 0.176776692 : f32
    %38 = vector.broadcast %cst_22 : f32 to vector<8x8xf32>
    %39 = arith.mulf %37, %38 : vector<8x8xf32>
    %c0_i32 = arith.constant 0 : i32
    %40 = vector.broadcast %c0_i32 : i32 to vector<8x8xi32>
    %41 = arith.addi %36, %40 : vector<8x8xi32>
    %42 = arith.cmpi sle, %41, %35 : vector<8x8xi32>
    %c0_i32_23 = arith.constant 0 : i32
    %43 = vector.broadcast %c0_i32_23 : i32 to vector<1x8xi32>
    %44 = arith.cmpi sgt, %3, %43 : vector<1x8xi32>
    %45 = vector.broadcast %44 : vector<1x8xi1> to vector<8x8xi1>
    %46 = arith.andi %42, %45 : vector<8x8xi1>
    %cst_24 = arith.constant -1.000000e+30 : f32
    %47 = vector.broadcast %cst_24 : f32 to vector<8x8xf32>
    %48 = arith.select %46, %39, %47 : vector<8x8xi1>, vector<8x8xf32>
    %cst_25 = arith.constant dense<0xFF800000> : vector<8xf32>
    %49 = vector.multi_reduction <maximumf>, %48, %cst_25 [1] : vector<8x8xf32> to vector<8xf32>
    %50 = vector.shape_cast %49 : vector<8xf32> to vector<8x1xf32>
    %51 = arith.maximumf %32, %50 : vector<8x1xf32>
    %52 = arith.subf %32, %51 : vector<8x1xf32>
    %53 = math.exp %52 : vector<8x1xf32>
    %54 = vector.broadcast %51 : vector<8x1xf32> to vector<8x8xf32>
    %55 = arith.subf %48, %54 : vector<8x8xf32>
    %56 = math.exp %55 : vector<8x8xf32>
    %57 = arith.mulf %53, %33 : vector<8x1xf32>
    %cst_26 = arith.constant dense<0.000000e+00> : vector<8xf32>
    %58 = vector.multi_reduction <add>, %56, %cst_26 [1] : vector<8x8xf32> to vector<8xf32>
    %59 = vector.shape_cast %58 : vector<8xf32> to vector<8x1xf32>
    %60 = arith.addf %57, %59 : vector<8x1xf32>
    %61 = vector.broadcast %53 : vector<8x1xf32> to vector<8x32xf32>
    %62 = arith.mulf %61, %34 : vector<8x32xf32>
    %cst_27 = arith.constant dense<0.000000e+00> : vector<8x32xf32>
    %63 = tpu.matmul %56, %31, %cst_27 {dimension_numbers = #tpu.dot_dimension_numbers<[1], [0], [0], [1], [0, 0, 1, 1], [], []>} : vector<8x8xf32>, vector<8x32xf32>, vector<8x32xf32> -> vector<8x32xf32>
    %64 = arith.addf %62, %63 : vector<8x32xf32>
    %65 = vector.broadcast %60 : vector<8x1xf32> to vector<8x32xf32>
    %66 = arith.divf %64, %65 : vector<8x32xf32>
    %67 = arith.truncf %66 : vector<8x32xf32> to vector<8x32xbf16>
    %c0_28 = arith.constant 0 : index
    %c0_29 = arith.constant 0 : index
    %68 = vector.load %arg6[%c0_28, %c0_29] : memref<32x32xbf16, #tpu.memory_space<vmem>>, vector<32x32xbf16>
    %69 = arith.extf %67 : vector<8x32xbf16> to vector<8x32xf32>
    %70 = arith.extf %68 : vector<32x32xbf16> to vector<32x32xf32>
    %cst_30 = arith.constant dense<0.000000e+00> : vector<8x32xf32>
    %71 = tpu.matmul %69, %70, %cst_30 {dimension_numbers = #tpu.dot_dimension_numbers<[1], [0], [0], [1], [0, 0, 1, 1], [], []>} : vector<8x32xf32>, vector<32x32xf32>, vector<8x32xf32> -> vector<8x32xf32>
    %72 = arith.extf %1 : vector<8x32xbf16> to vector<8x32xf32>
    %73 = arith.addf %72, %71 : vector<8x32xf32>
    %74 = arith.truncf %73 : vector<8x32xf32> to vector<8x32xbf16>
    %c0_31 = arith.constant 0 : index
    %c0_32 = arith.constant 0 : index
    %75 = vector.load %arg10[%c0_31, %c0_32] : memref<1x32xbf16, #tpu.memory_space<vmem>>, vector<1x32xbf16>
    %76 = arith.extf %74 : vector<8x32xbf16> to vector<8x32xf32>
    %77 = arith.mulf %76, %76 : vector<8x32xf32>
    %cst_33 = arith.constant dense<0.000000e+00> : vector<8xf32>
    %78 = vector.multi_reduction <add>, %77, %cst_33 [1] : vector<8x32xf32> to vector<8xf32>
    %79 = vector.shape_cast %78 : vector<8xf32> to vector<8x1xf32>
    %cst_34 = arith.constant 3.200000e+01 : f32
    %80 = vector.broadcast %cst_34 : f32 to vector<8x1xf32>
    %81 = arith.divf %79, %80 : vector<8x1xf32>
    %cst_35 = arith.constant 9.99999997E-7 : f32
    %82 = vector.broadcast %cst_35 : f32 to vector<8x1xf32>
    %83 = arith.addf %81, %82 : vector<8x1xf32>
    %84 = math.rsqrt %83 : vector<8x1xf32>
    %85 = vector.broadcast %84 : vector<8x1xf32> to vector<8x32xf32>
    %86 = arith.mulf %76, %85 : vector<8x32xf32>
    %87 = arith.extf %75 : vector<1x32xbf16> to vector<1x32xf32>
    %88 = vector.broadcast %87 : vector<1x32xf32> to vector<8x32xf32>
    %89 = arith.mulf %86, %88 : vector<8x32xf32>
    %90 = arith.truncf %89 : vector<8x32xf32> to vector<8x32xbf16>
    %c0_36 = arith.constant 0 : index
    %c0_37 = arith.constant 0 : index
    %91 = vector.load %arg7[%c0_36, %c0_37] : memref<32x128xbf16, #tpu.memory_space<vmem>>, vector<32x128xbf16>
    %92 = arith.extf %90 : vector<8x32xbf16> to vector<8x32xf32>
    %93 = arith.extf %91 : vector<32x128xbf16> to vector<32x128xf32>
    %cst_38 = arith.constant dense<0.000000e+00> : vector<8x128xf32>
    %94 = tpu.matmul %92, %93, %cst_38 {dimension_numbers = #tpu.dot_dimension_numbers<[1], [0], [0], [1], [0, 0, 1, 1], [], []>} : vector<8x32xf32>, vector<32x128xf32>, vector<8x128xf32> -> vector<8x128xf32>
    %95 = arith.mulf %94, %94 : vector<8x128xf32>
    %96 = arith.mulf %94, %95 : vector<8x128xf32>
    %cst_39 = arith.constant 4.471500e-02 : f32
    %97 = vector.broadcast %cst_39 : f32 to vector<8x128xf32>
    %98 = arith.mulf %97, %96 : vector<8x128xf32>
    %99 = arith.addf %94, %98 : vector<8x128xf32>
    %cst_40 = arith.constant 0.797884583 : f32
    %100 = vector.broadcast %cst_40 : f32 to vector<8x128xf32>
    %101 = arith.mulf %100, %99 : vector<8x128xf32>
    %102 = math.tanh %101 : vector<8x128xf32>
    %cst_41 = arith.constant 1.000000e+00 : f32
    %103 = vector.broadcast %cst_41 : f32 to vector<8x128xf32>
    %104 = arith.addf %103, %102 : vector<8x128xf32>
    %cst_42 = arith.constant 5.000000e-01 : f32
    %105 = vector.broadcast %cst_42 : f32 to vector<8x128xf32>
    %106 = arith.mulf %105, %104 : vector<8x128xf32>
    %107 = arith.mulf %94, %106 : vector<8x128xf32>
    %108 = arith.truncf %107 : vector<8x128xf32> to vector<8x128xbf16>
    %c0_43 = arith.constant 0 : index
    %c0_44 = arith.constant 0 : index
    %109 = vector.load %arg8[%c0_43, %c0_44] : memref<128x32xbf16, #tpu.memory_space<vmem>>, vector<128x32xbf16>
    %110 = arith.extf %108 : vector<8x128xbf16> to vector<8x128xf32>
    %111 = arith.extf %109 : vector<128x32xbf16> to vector<128x32xf32>
    %cst_45 = arith.constant dense<0.000000e+00> : vector<8x32xf32>
    %112 = tpu.matmul %110, %111, %cst_45 {dimension_numbers = #tpu.dot_dimension_numbers<[1], [0], [0], [1], [0, 0, 1, 1], [], []>} : vector<8x128xf32>, vector<128x32xf32>, vector<8x32xf32> -> vector<8x32xf32>
    %113 = arith.extf %74 : vector<8x32xbf16> to vector<8x32xf32>
    %114 = arith.addf %113, %112 : vector<8x32xf32>
    %115 = arith.truncf %114 : vector<8x32xf32> to vector<8x32xbf16>
    %c0_46 = arith.constant 0 : index
    %c0_47 = arith.constant 0 : index
    %116 = vector.load %arg11[%c0_46, %c0_47] : memref<1x32xbf16, #tpu.memory_space<vmem>>, vector<1x32xbf16>
    %117 = arith.extf %115 : vector<8x32xbf16> to vector<8x32xf32>
    %118 = arith.mulf %117, %117 : vector<8x32xf32>
    %cst_48 = arith.constant dense<0.000000e+00> : vector<8xf32>
    %119 = vector.multi_reduction <add>, %118, %cst_48 [1] : vector<8x32xf32> to vector<8xf32>
    %120 = vector.shape_cast %119 : vector<8xf32> to vector<8x1xf32>
    %cst_49 = arith.constant 3.200000e+01 : f32
    %121 = vector.broadcast %cst_49 : f32 to vector<8x1xf32>
    %122 = arith.divf %120, %121 : vector<8x1xf32>
    %cst_50 = arith.constant 9.99999997E-7 : f32
    %123 = vector.broadcast %cst_50 : f32 to vector<8x1xf32>
    %124 = arith.addf %122, %123 : vector<8x1xf32>
    %125 = math.rsqrt %124 : vector<8x1xf32>
    %126 = vector.broadcast %125 : vector<8x1xf32> to vector<8x32xf32>
    %127 = arith.mulf %117, %126 : vector<8x32xf32>
    %128 = arith.extf %116 : vector<1x32xbf16> to vector<1x32xf32>
    %129 = vector.broadcast %128 : vector<1x32xf32> to vector<8x32xf32>
    %130 = arith.mulf %127, %129 : vector<8x32xf32>
    %131 = arith.truncf %130 : vector<8x32xf32> to vector<8x32xbf16>
    %132 = vector.shape_cast %131 : vector<8x32xbf16> to vector<1x8x32xbf16>
    %c0_51 = arith.constant 0 : index
    %c0_52 = arith.constant 0 : index
    %c0_53 = arith.constant 0 : index
    %133 = vector.load %arg12[%c0_51, %c0_52, %c0_53] : memref<1x8x32xbf16, #tpu.memory_space<vmem>>, vector<1x8x32xbf16>
    tpu.vector_store %arg12[%c0_51, %c0_52, %c0_53], %132 {strides = array<i32>} : memref<1x8x32xbf16, #tpu.memory_space<vmem>>, vector<1x8x32xbf16>,
    return
  }
  func.func @transform_0(%arg0: i32) -> (i32, i32, i32) {
    %c0_i32 = arith.constant 0 : i32
    %c0_i32_0 = arith.constant 0 : i32
    %c0_i32_1 = arith.constant 0 : i32
    return %arg0, %c0_i32, %c0_i32_0 : i32, i32, i32
  }
  func.func @transform_1(%arg0: i32) -> (i32, i32, i32) {
    %c0_i32 = arith.constant 0 : i32
    %c0_i32_0 = arith.constant 0 : i32
    %c0_i32_1 = arith.constant 0 : i32
    return %arg0, %c0_i32, %c0_i32_0 : i32, i32, i32
  }
  func.func @transform_2(%arg0: i32) -> (i32, i32) {
    %c0_i32 = arith.constant 0 : i32
    %c0_i32_0 = arith.constant 0 : i32
    %c0_i32_1 = arith.constant 0 : i32
    return %c0_i32, %c0_i32_0 : i32, i32
  }
  func.func @transform_3(%arg0: i32) -> (i32, i32) {
    %c0_i32 = arith.constant 0 : i32
    %c0_i32_0 = arith.constant 0 : i32
    %c0_i32_1 = arith.constant 0 : i32
    return %c0_i32, %c0_i32_0 : i32, i32
  }
  func.func @transform_4(%arg0: i32) -> (i32, i32) {
    %c0_i32 = arith.constant 0 : i32
    %c0_i32_0 = arith.constant 0 : i32
    %c0_i32_1 = arith.constant 0 : i32
    return %c0_i32, %c0_i32_0 : i32, i32
  }
  func.func @transform_5(%arg0: i32) -> (i32, i32) {
    %c0_i32 = arith.constant 0 : i32
    %c0_i32_0 = arith.constant 0 : i32
    %c0_i32_1 = arith.constant 0 : i32
    return %c0_i32, %c0_i32_0 : i32, i32
  }
  func.func @transform_6(%arg0: i32) -> (i32, i32) {
    %c0_i32 = arith.constant 0 : i32
    %c0_i32_0 = arith.constant 0 : i32
    %c0_i32_1 = arith.constant 0 : i32
    return %c0_i32, %c0_i32_0 : i32, i32
  }
  func.func @transform_7(%arg0: i32) -> (i32, i32) {
    %c0_i32 = arith.constant 0 : i32
    %c0_i32_0 = arith.constant 0 : i32
    %c0_i32_1 = arith.constant 0 : i32
    return %c0_i32, %c0_i32_0 : i32, i32
  }
  func.func @transform_8(%arg0: i32) -> (i32, i32) {
    %c0_i32 = arith.constant 0 : i32
    %c0_i32_0 = arith.constant 0 : i32
    %c0_i32_1 = arith.constant 0 : i32
    return %c0_i32, %c0_i32_0 : i32, i32
  }
  func.func @transform_9(%arg0: i32) -> (i32, i32) {
    %c0_i32 = arith.constant 0 : i32
    %c0_i32_0 = arith.constant 0 : i32
    %c0_i32_1 = arith.constant 0 : i32
    return %c0_i32, %c0_i32_0 : i32, i32
  }
  func.func @transform_10(%arg0: i32) -> (i32, i32) {
    %c0_i32 = arith.constant 0 : i32
    %c0_i32_0 = arith.constant 0 : i32
    %c0_i32_1 = arith.constant 0 : i32
    return %c0_i32, %c0_i32_0 : i32, i32
  }
  func.func @transform_11(%arg0: i32) -> (i32, i32, i32) {
    %c0_i32 = arith.constant 0 : i32
    %c0_i32_0 = arith.constant 0 : i32
    %c0_i32_1 = arith.constant 0 : i32
    return %arg0, %c0_i32, %c0_i32_0 : i32, i32, i32
  }
}

module attributes {stable_mosaic.version = 11 : i64} {
  func.func @mh_head_kernel(%arg0: i32, %arg1: i32, %arg2: i32, %arg3: memref<16x32xbf16, #tpu.memory_space<vmem>>, %arg4: memref<1x32x128xbf16, #tpu.memory_space<vmem>>, %arg5: memref<1x1x128xbf16, #tpu.memory_space<vmem>>, %arg6: memref<1x16x128xbf16, #tpu.memory_space<vmem>>) attributes {dimension_semantics = [#tpu.dimension_semantics<parallel>, #tpu.dimension_semantics<parallel>, #tpu.dimension_semantics<parallel>], iteration_bounds = array<i64: 2, 1, 1>, scalar_prefetch = 0 : i64, scratch_operands = 0 : i64, tpu.core_type = #tpu.core_type<tc>, window_params = [{transform_indices = @transform_0, window_bounds = array<i64: 16, 32>}, {transform_indices = @transform_1, window_bounds = array<i64: 1, 32, 128>}, {transform_indices = @transform_2, window_bounds = array<i64: 1, 1, 128>}, {transform_indices = @transform_3, window_bounds = array<i64: 1, 16, 128>}]} {
    %c0 = arith.constant 0 : index
    %c0_0 = arith.constant 0 : index
    %0 = vector.load %arg3[%c0, %c0_0] : memref<16x32xbf16, #tpu.memory_space<vmem>>, vector<16x32xbf16>
    %c0_1 = arith.constant 0 : index
    %c0_2 = arith.constant 0 : index
    %c0_3 = arith.constant 0 : index
    %1 = vector.load %arg4[%c0_1, %c0_2, %c0_3] : memref<1x32x128xbf16, #tpu.memory_space<vmem>>, vector<1x32x128xbf16>
    %2 = vector.shape_cast %1 : vector<1x32x128xbf16> to vector<32x128xbf16>
    %3 = arith.extf %0 : vector<16x32xbf16> to vector<16x32xf32>
    %4 = arith.extf %2 : vector<32x128xbf16> to vector<32x128xf32>
    %cst = arith.constant dense<0.000000e+00> : vector<16x128xf32>
    %5 = tpu.matmul %3, %4, %cst {dimension_numbers = #tpu.dot_dimension_numbers<[1], [0], [0], [1], [0, 0, 1, 1], [], []>} : vector<16x32xf32>, vector<32x128xf32>, vector<16x128xf32> -> vector<16x128xf32>
    %c0_4 = arith.constant 0 : index
    %c0_5 = arith.constant 0 : index
    %c0_6 = arith.constant 0 : index
    %6 = vector.load %arg5[%c0_4, %c0_5, %c0_6] : memref<1x1x128xbf16, #tpu.memory_space<vmem>>, vector<1x1x128xbf16>
    %7 = vector.shape_cast %6 : vector<1x1x128xbf16> to vector<1x128xbf16>
    %8 = arith.extf %7 : vector<1x128xbf16> to vector<1x128xf32>
    %9 = vector.broadcast %8 : vector<1x128xf32> to vector<16x128xf32>
    %10 = arith.addf %5, %9 : vector<16x128xf32>
    %11 = vector.shape_cast %10 : vector<16x128xf32> to vector<1x16x128xf32>
    %12 = arith.truncf %11 : vector<1x16x128xf32> to vector<1x16x128xbf16>
    %c0_7 = arith.constant 0 : index
    %c0_8 = arith.constant 0 : index
    %c0_9 = arith.constant 0 : index
    %13 = vector.load %arg6[%c0_7, %c0_8, %c0_9] : memref<1x16x128xbf16, #tpu.memory_space<vmem>>, vector<1x16x128xbf16>
    tpu.vector_store %arg6[%c0_7, %c0_8, %c0_9], %12 {strides = array<i32>} : memref<1x16x128xbf16, #tpu.memory_space<vmem>>, vector<1x16x128xbf16>,
    return
  }
  func.func @transform_0(%arg0: i32, %arg1: i32, %arg2: i32) -> (i32, i32) {
    %c0_i32 = arith.constant 0 : i32
    %c0_i32_0 = arith.constant 0 : i32
    return %arg1, %c0_i32 : i32, i32
  }
  func.func @transform_1(%arg0: i32, %arg1: i32, %arg2: i32) -> (i32, i32, i32) {
    %c0_i32 = arith.constant 0 : i32
    %c0_i32_0 = arith.constant 0 : i32
    return %arg0, %c0_i32, %arg2 : i32, i32, i32
  }
  func.func @transform_2(%arg0: i32, %arg1: i32, %arg2: i32) -> (i32, i32, i32) {
    %c0_i32 = arith.constant 0 : i32
    %c0_i32_0 = arith.constant 0 : i32
    return %arg0, %c0_i32, %arg2 : i32, i32, i32
  }
  func.func @transform_3(%arg0: i32, %arg1: i32, %arg2: i32) -> (i32, i32, i32) {
    %c0_i32 = arith.constant 0 : i32
    return %arg0, %arg1, %arg2 : i32, i32, i32
  }
}

</mosaic_0001>

<llo_original>
// kernel: multi_head_causal_lm_forward.3
$region0: #{multi_head_causal_lm_forward.3}
  #allocation0 [shape = 'u32[]', space=smem, size = 0x4, offset = 0x4, fixed_abs, tag = 'smem constant byte address 0x4 - core index']
  #allocation1 [shape = 'u32[72,128]{1,0:T(1,128)}', space=vmem, size = 0x9000, scoped, tag = 'internal scratch']
  %s0 = inlined_call_operand.vmem [shape: bf16[16,32], index: 0, kind: input, shape index: {}]
  %s1 = inlined_call_operand.vmem [shape: bf16[2,32,128], index: 1, kind: input, shape index: {}]
  %s2 = inlined_call_operand.vmem [shape: bf16[2,1,128], index: 2, kind: input, shape index: {}]
  %s3 = inlined_call_operand.hbm [shape: bf16[2,16,128], index: 3, kind: output, shape index: {}]
  %s4 = sld [smem:[#allocation0]]
  $region45: #{multi_head_causal_lm_forward.3} parent=0
    _
  %s6 = ssub.s32 1, %s4
  %s7 = scalar_select 0, %s6, %s4
  $region1: #{multi_head_causal_lm_forward.3} parent=0
    #allocation2 [shape = 'u8[8192]{0}', space=vmem, size = 0x2000, scoped, tag = 'output window, operand 0']
    #allocation3 [shape = 's32[2]{0}', space=sflag, size = 0x8, scoped, tag = 'scoped memory for multi_head_causal_lm_forward.3']
    %8 = vsyncpa [#allocation3], 0
    %s9 = scalar_lea.sflag [#allocation3], 1
    %10 = vsyncpa %s9, 0
    loop: start=0, step=1, limit=4
    $region2: #{multi_head_causal_lm_forward.3} parent=1 // loop_pre_header
      _
    $region3: #{multi_head_causal_lm_forward.3} parent=1 // loop_header
      %s12 = sphi 0, %s16
      %p13 = scmp.ge.s32.totalorder %s12, 4
      %s19 = sphi 0, %s38
      %s20 = sphi 0, %s34
      %s21 = sphi 0, %s30
      %s22 = sphi 0, %s19
      %s23 = sphi 0, %s20
      %s24 = sphi 0, %s21
      %s25 = sphi 0, %s22
      %s26 = sphi 0, %s23
      %s27 = sphi 0, %s24
      %s41 = sphi 0, %s43
      %s44 = sphi 0, %s41
      %s45 = sphi 0, %s44
      %s61 = sphi 0, %s45
      %s69 = sphi 0, %s71
      %s72 = sphi 0, %s69
      %s73 = sphi 0, %s72
      %s89 = sphi 0, %s73
      %s97 = sphi 0, %s99
      %s100 = sphi 0, %s97
      %s101 = sphi 0, %s100
      %s117 = sphi 0, %s101
      %s127 = sphi 0, %s129
      %s130 = sphi 0, %s127
      %s131 = sphi 0, %s130
      %s147 = sphi 0, %s131
    $region4: #{multi_head_causal_lm_forward.3} parent=1 // loop_header_branch
      %15 = sbr.rel (%p13) target = $region8
    $region5: #{multi_head_causal_lm_forward.3} parent=1 // loop_body
      %s17 = ssub.s32 %s12, 1
      %s18 = ssub.s32 %s12, 2
      %s28 = sadd.s32 1, %s21
      %p29 = scmp.ge.s32.totalorder %s28, 1
      %s30 = scalar_select %p29, 0, %s28
      %s31 = sadd.s32 1, %s20
      %s32 = scalar_select %p29, %s31, %s20
      %p33 = scmp.ge.s32.totalorder %s32, 1
      %s34 = scalar_select %p33, 0, %s32
      %s35 = sadd.s32 1, %s19
      %s36 = scalar_select %p33, %s35, %s19
      %p37 = scmp.ge.s32.totalorder %s36, 2
      %s38 = scalar_select %p37, 0, %s36
      %s39 = ssub.s32 %s20, %s34
      %p40 = scmp.eq.s32.totalorder %s39, 0
      %s42 = sadd.s32 %s41, 1
      %s43 = scalar_select %p40, %s41, %s42
      %p46 = pneg %p40
      %p47 = scmp.eq.s32.totalorder %s12, 1
      %p48 = por %p46, %p47
      %p49 = scmp.ne.s32.totalorder %s41, %s44
      %p50 = scmp.eq.s32.totalorder %s12, 0
      %p51 = por %p49, %p50
      %p52 = scmp.ne.s32.totalorder %s41, %s44
      %p53 = scmp.eq.s32.totalorder %s17, 1
      %p54 = por %p52, %p53
      %p55 = scmp.ne.s32.totalorder %s44, %s45
      %p56 = scmp.eq.s32.totalorder %s17, 0
      %p57 = por %p55, %p56
      %p58 = scmp.ne.s32.totalorder %s44, %s45
      %p59 = scmp.eq.s32.totalorder %s18, 1
      %p60 = por %p58, %p59
      %p62 = scmp.ne.s32.totalorder %s45, %s61
      %p63 = scmp.eq.s32.totalorder %s18, 0
      %p64 = por %p62, %p63
      %s65 = ssub.s32 %s19, %s38
      %s66 = ssub.s32 %s21, %s30
      %s67 = sor.u32 %s65, %s66
      %p68 = scmp.eq.s32.totalorder %s67, 0
      %s70 = sadd.s32 %s69, 1
      %s71 = scalar_select %p68, %s69, %s70
      %p74 = pneg %p68
      %p75 = scmp.eq.s32.totalorder %s12, 1
      %p76 = por %p74, %p75
      %p77 = scmp.ne.s32.totalorder %s69, %s72
      %p78 = scmp.eq.s32.totalorder %s12, 0
      %p79 = por %p77, %p78
      %p80 = scmp.ne.s32.totalorder %s69, %s72
      %p81 = scmp.eq.s32.totalorder %s17, 1
      %p82 = por %p80, %p81
      %p83 = scmp.ne.s32.totalorder %s72, %s73
      %p84 = scmp.eq.s32.totalorder %s17, 0
      %p85 = por %p83, %p84
      %p86 = scmp.ne.s32.totalorder %s72, %s73
      %p87 = scmp.eq.s32.totalorder %s18, 1
      %p88 = por %p86, %p87
      %p90 = scmp.ne.s32.totalorder %s73, %s89
      %p91 = scmp.eq.s32.totalorder %s18, 0
      %p92 = por %p90, %p91
      %s93 = ssub.s32 %s19, %s38
      %s94 = ssub.s32 %s21, %s30
      %s95 = sor.u32 %s93, %s94
      %p96 = scmp.eq.s32.totalorder %s95, 0
      %s98 = sadd.s32 %s97, 1
      %s99 = scalar_select %p96, %s97, %s98
      %p102 = pneg %p96
      %p103 = scmp.eq.s32.totalorder %s12, 1
      %p104 = por %p102, %p103
      %p105 = scmp.ne.s32.totalorder %s97, %s100
      %p106 = scmp.eq.s32.totalorder %s12, 0
      %p107 = por %p105, %p106
      %p108 = scmp.ne.s32.totalorder %s97, %s100
      %p109 = scmp.eq.s32.totalorder %s17, 1
      %p110 = por %p108, %p109
      %p111 = scmp.ne.s32.totalorder %s100, %s101
      %p112 = scmp.eq.s32.totalorder %s17, 0
      %p113 = por %p111, %p112
      %p114 = scmp.ne.s32.totalorder %s100, %s101
      %p115 = scmp.eq.s32.totalorder %s18, 1
      %p116 = por %p114, %p115
      %p118 = scmp.ne.s32.totalorder %s101, %s117
      %p119 = scmp.eq.s32.totalorder %s18, 0
      %p120 = por %p118, %p119
      %s121 = ssub.s32 %s19, %s38
      %s122 = ssub.s32 %s20, %s34
      %s123 = sor.u32 %s121, %s122
      %s124 = ssub.s32 %s21, %s30
      %s125 = sor.u32 %s123, %s124
      %p126 = scmp.eq.s32.totalorder %s125, 0
      %s128 = sadd.s32 %s127, 1
      %s129 = scalar_select %p126, %s127, %s128
      %p132 = pneg %p126
      %p133 = scmp.eq.s32.totalorder %s12, 1
      %p134 = por %p132, %p133
      %p135 = scmp.ne.s32.totalorder %s127, %s130
      %p136 = scmp.eq.s32.totalorder %s12, 0
      %p137 = por %p135, %p136
      %p138 = scmp.ne.s32.totalorder %s127, %s130
      %p139 = scmp.eq.s32.totalorder %s17, 1
      %p140 = por %p138, %p139
      %p141 = scmp.ne.s32.totalorder %s130, %s131
      %p142 = scmp.eq.s32.totalorder %s17, 0
      %p143 = por %p141, %p142
      %p144 = scmp.ne.s32.totalorder %s130, %s131
      %p145 = scmp.eq.s32.totalorder %s18, 1
      %p146 = por %p144, %p145
      %p148 = scmp.ne.s32.totalorder %s131, %s147
      %p149 = scmp.eq.s32.totalorder %s18, 0
      %p150 = por %p148, %p149
      %p151 = scmp.le.s32.totalorder 1, %s12
      %p152 = scmp.lt.s32.totalorder %s12, 3
      %p153 = pnand %p151, %p152
      %p154 = pneg %p153
      // Predicated region
      $region9: #{multi_head_causal_lm_forward.3} parent=5 // pred_check
        _
      $region10: #{multi_head_causal_lm_forward.3} parent=5 // pred_check_branch
        %156 = sbr.rel (%p153) target = $region12
      $region11: #{multi_head_causal_lm_forward.3} parent=5 // pred_region
        %s157 = ssub.s32 %s12, 1
        // Predicated region
        $region13: #{multi_head_causal_lm_forward.3} parent=11 // pred_check
          %p158 = pneg %p57
        $region14: #{multi_head_causal_lm_forward.3} parent=11 // pred_check_branch
          %160 = sbr.rel (%p158) target = $region16
        $region15: #{multi_head_causal_lm_forward.3} parent=11 // pred_region
          %s161 = smul.u32 2, %s23
          %p162 = scmp.lt.s32.totalorder %s161, 1
          %s163 = scalar_select %p162, %s161, 1
          %s164 = smul.addr %s163, 4
          %s165 = scalar_lea.vmem %s0, %s164
          %s166 = smul.u32 2, %s23
        $region16: #{multi_head_causal_lm_forward.3} parent=11 // pred_fallthru
          _
      $region12: #{multi_head_causal_lm_forward.3} parent=5 // pred_fallthru
        _
      %p167 = scmp.lt.s32.totalorder %s12, 2
      // Predicated region
      $region17: #{multi_head_causal_lm_forward.3} parent=5 // pred_check
        %p168 = pneg %p167
      $region18: #{multi_head_causal_lm_forward.3} parent=5 // pred_check_branch
        %170 = sbr.rel (%p168) target = $region20
      $region19: #{multi_head_causal_lm_forward.3} parent=5 // pred_region
        // Predicated region
        $region21: #{multi_head_causal_lm_forward.3} parent=19 // pred_check
          %p171 = pneg %p79
        $region22: #{multi_head_causal_lm_forward.3} parent=19 // pred_check_branch
          %173 = sbr.rel (%p171) target = $region24
        $region23: #{multi_head_causal_lm_forward.3} parent=19 // pred_region
          %p174 = scmp.lt.s32.totalorder %s19, 1
          %s175 = scalar_select %p174, %s19, 1
          %p176 = scmp.lt.s32.totalorder %s21, 0
          %s177 = scalar_select %p176, %s21, 0
          %s178 = smul.addr %s175, 4
          %s179 = sadd.s32 %s177, %s178
          %s180 = smul.addr %s179, 4
          %s181 = scalar_lea.vmem %s1, %s180
        $region24: #{multi_head_causal_lm_forward.3} parent=19 // pred_fallthru
          _
        // Predicated region
        $region25: #{multi_head_causal_lm_forward.3} parent=19 // pred_check
          %p182 = pneg %p107
        $region26: #{multi_head_causal_lm_forward.3} parent=19 // pred_check_branch
          %184 = sbr.rel (%p182) target = $region28
        $region27: #{multi_head_causal_lm_forward.3} parent=19 // pred_region
          %p185 = scmp.lt.s32.totalorder %s19, 1
          %s186 = scalar_select %p185, %s19, 1
          %p187 = scmp.lt.s32.totalorder %s21, 0
          %s188 = scalar_select %p187, %s21, 0
          %s189 = sadd.s32 %s188, %s186
          %s190 = scalar_lea.vmem %s2, %s189
        $region28: #{multi_head_causal_lm_forward.3} parent=19 // pred_fallthru
          _
      $region20: #{multi_head_causal_lm_forward.3} parent=5 // pred_fallthru
        _
      %p191 = scmp.le.s32.totalorder 1, %s12
      %p192 = scmp.lt.s32.totalorder %s12, 3
      %p193 = pnand %p191, %p192
      %p194 = pneg %p193
      // Predicated region
      $region29: #{multi_head_causal_lm_forward.3} parent=5 // pred_check
        _
      $region30: #{multi_head_causal_lm_forward.3} parent=5 // pred_check_branch
        %196 = sbr.rel (%p193) target = $region32
      $region31: #{multi_head_causal_lm_forward.3} parent=5 // pred_region
        %s197 = ssub.s32 %s12, 1
        %s198 = smul.u32 2, %s23
        %p199 = scmp.lt.s32.totalorder %s198, 1
        %s200 = scalar_select %p199, %s198, 1
        %s201 = smul.addr %s200, 4
        %s202 = scalar_lea.vmem %s0, %s201
        %p203 = pneg %p57
        %p204 = pneg %p54
        %p205 = scmp.lt.s32.totalorder %s22, 1
        %s206 = scalar_select %p205, %s22, 1
        %p207 = scmp.lt.s32.totalorder %s24, 0
        %s208 = scalar_select %p207, %s24, 0
        %s209 = smul.addr %s206, 4
        %s210 = sadd.s32 %s208, %s209
        %s211 = smul.addr %s210, 4
        %s212 = scalar_lea.vmem %s1, %s211
        %p213 = pneg %p85
        %p214 = pneg %p82
        %p215 = scmp.lt.s32.totalorder %s22, 1
        %s216 = scalar_select %p215, %s22, 1
        %p217 = scmp.lt.s32.totalorder %s24, 0
        %s218 = scalar_select %p217, %s24, 0
        %s219 = sadd.s32 %s218, %s216
        %s220 = scalar_lea.vmem %s2, %s219
        %p221 = pneg %p113
        %p222 = pneg %p110
        %p223 = pneg %p143
        %p224 = pneg %p140
        %s225 = sand.u32 %s130, 1
        %s226 = scalar_lea.sflag [#allocation3], %s225
        %s227 = sand.u32 %s130, 1
        %s228 = smul.addr %s227, 8
        %s229 = scalar_lea.vmem [#allocation2], %s228
        %s230 = smul.u32 2, %s23
        %p231 = scmp.lt.s32.totalorder %s230, 1
        %s232 = scalar_select %p231, %s230, 1
        %s233 = smul.addr %s232, 4
        %s234 = scalar_lea.vmem %s0, %s233
        %s235 = smul.u32 2, %s23
        %p236 = scmp.lt.s32.totalorder %s22, 1
        %s237 = scalar_select %p236, %s22, 1
        %p238 = scmp.lt.s32.totalorder %s24, 0
        %s239 = scalar_select %p238, %s24, 0
        %s240 = smul.addr %s237, 4
        %s241 = sadd.s32 %s239, %s240
        %s242 = smul.addr %s241, 4
        %s243 = scalar_lea.vmem %s1, %s242
        %p244 = scmp.lt.s32.totalorder %s22, 1
        %s245 = scalar_select %p244, %s22, 1
        %p246 = scmp.lt.s32.totalorder %s24, 0
        %s247 = scalar_select %p246, %s24, 0
        %s248 = sadd.s32 %s247, %s245
        %s249 = scalar_lea.vmem %s2, %s248
        %s250 = smul.u32 2, %s23
        %v251 = vld [vmem:[%s234] sm:$0xf]
        %v252 = vld [vmem:[%s234 + $0x4] sm:$0xf]
        %v253 = vld [vmem:[%s243] sm:$0xf]
        %v254 = vld [vmem:[%s243 + $0x4] sm:$0xf]
        %v255 = vld [vmem:[%s243 + $0x8] sm:$0xf]
        %v256 = vld [vmem:[%s243 + $0xc] sm:$0xf]
        %v257 = vunpack.c.l.bf16 %v251
        %v258 = vunpack.c.l.bf16 %v252
        %v259 = vunpack.c.l.bf16 %v253
        %v260 = vunpack.c.l.bf16 %v254
        %v261 = vunpack.c.l.bf16 %v255
        %v262 = vunpack.c.l.bf16 %v256
        %v263 = vld [vmem:[%s249] sm:$0x1]
        %v264 = vunpack.c.l.bf16 %v263
        %v265 = vperm.slane %v264, 0
        %vm266 = vcmask 261120
        %v268 = vsel %vm266, %v257, 0
        %v271 = vsel %vm266, %v258, 0
        %273 = vmatpush.msra.mxu0 0.0
        %274 = vmatpush.msra.mxu0 0.0
        %275 = vmatpush.msra.mxu0 0.0
        %276 = vmatpush.msra.mxu0 0.0
        %277 = vmatpush.msra.mxu0 0.0
        %278 = vmatpush.msra.mxu0 0.0
        %279 = vmatpush.msra.mxu0 0.0
        %280 = vmatpush.msra.mxu0 0.0
        %281 = vmatpush.msra.mxu0 0.0
        %282 = vmatpush.msra.mxu0 0.0
        %283 = vmatpush.msra.mxu0 0.0
        %284 = vmatpush.msra.mxu0 0.0
        %285 = vmatpush.msra.mxu0 %v262
        %286 = vmatpush.msra.mxu0 %v261
        %287 = vmatpush.msra.mxu0 %v260
        %288 = vmatpush.msra.mxu0 %v259
        %289 = vmatmul.f32.gmra.mxu0 %v268
        %v290 = vpop.f32.mrf.mxu0
        %v291 = vadd.f32 %v265, %v290
        %292 = vmatmul.f32.gmra.mxu0 %v271
        %v293 = vpop.f32.mrf.mxu0
        %v294 = vadd.f32 %v265, %v293
        %295 = vdwg.mxu0
        %v296 = vpack.c.bf16 %v291, %v291
        %v297 = vpack.c.bf16 %v294, %v294
        %298 = vst [vmem:[%s229] sm:$0xf] %v296
        %299 = vst [vmem:[%s229 + $0x4] sm:$0xf] %v297
        %s300 = sand.u32 %s130, 1
        %s301 = scalar_lea.sflag [#allocation3], %s300
        %s302 = sand.u32 %s130, 1
        %s303 = smul.addr %s302, 8
        %s304 = scalar_lea.vmem [#allocation2], %s303
        // Predicated region
        $region33: #{multi_head_causal_lm_forward.3} parent=31 // pred_check
          %p305 = pneg %p140
        $region34: #{multi_head_causal_lm_forward.3} parent=31 // pred_check_branch
          %307 = sbr.rel (%p305) target = $region36
        $region35: #{multi_head_causal_lm_forward.3} parent=31 // pred_region
          %s308 = smul.u32 2, %s23
          %310 = vsyncadd %s301, 0
          %s311 = sadd.s32 %s24, %s308
          %s312 = smul.addr %s22, 2
          %s313 = sadd.s32 %s311, %s312
          %s314 = smul.addr %s313, 4
          %s315 = scalar_lea.hbm %s3, %s314
          %s316 = sshll.u32 %s304, 4
          %s317 = int_to_ptr.vmem [resolvable:$true] %s316
          %s318 = sshll.u32 %s315, 4
          %s319 = int_to_ptr.hbm [resolvable:$true] %s318
          %324 = dma.vmem_to_hbm [thread:$0]  %s317, 128, %s319, %s301, 64, 64, 4
        $region36: #{multi_head_causal_lm_forward.3} parent=31 // pred_fallthru
          _
      $region32: #{multi_head_causal_lm_forward.3} parent=5 // pred_fallthru
        _
      %p325 = scmp.le.s32.totalorder 2, %s12
      // Predicated region
      $region37: #{multi_head_causal_lm_forward.3} parent=5 // pred_check
        %p326 = pneg %p325
      $region38: #{multi_head_causal_lm_forward.3} parent=5 // pred_check_branch
        %328 = sbr.rel (%p326) target = $region40
      $region39: #{multi_head_causal_lm_forward.3} parent=5 // pred_region
        %s329 = ssub.s32 %s12, 2
        // Predicated region
        $region41: #{multi_head_causal_lm_forward.3} parent=39 // pred_check
          %p330 = pneg %p146
        $region42: #{multi_head_causal_lm_forward.3} parent=39 // pred_check_branch
          %332 = sbr.rel (%p330) target = $region44
        $region43: #{multi_head_causal_lm_forward.3} parent=39 // pred_region
          %s333 = sand.u32 %s131, 1
          %s334 = scalar_lea.sflag [#allocation3], %s333
          %s335 = sand.u32 %s131, 1
          %s336 = smul.addr %s335, 8
          %s337 = scalar_lea.vmem [#allocation2], %s336
          %339 = dma.done %s334, 128
        $region44: #{multi_head_causal_lm_forward.3} parent=39 // pred_fallthru
          _
      $region40: #{multi_head_causal_lm_forward.3} parent=5 // pred_fallthru
        _
    $region6: #{multi_head_causal_lm_forward.3} parent=1 // loop_footer
      %s16 = sadd.s32 1, %s12
    $region7: #{multi_head_causal_lm_forward.3} parent=1 // loop_footer_branch
      %11 = sbr.rel target = $region3
    $region8: #{multi_head_causal_lm_forward.3} parent=1 // loop_exit
      _
    %340 = vsyncpa [#allocation3], 1
    %s341 = scalar_lea.sflag [#allocation3], 1
    %342 = vsyncpa %s341, 1

// kernel: multi_head_causal_lm_forward.2
$region0: #{multi_head_causal_lm_forward.2}
  #allocation0 [shape = 'u32[]', space=smem, size = 0x4, offset = 0x4, fixed_abs, tag = 'smem constant byte address 0x4 - core index']
  #allocation1 [shape = 'u32[72,128]{1,0:T(1,128)}', space=vmem, size = 0x9000, scoped, tag = 'internal scratch']
  %s0 = inlined_call_operand.vmem [shape: bf16[2,8,32], index: 0, kind: input, shape index: {}]
  %s1 = inlined_call_operand.vmem [shape: s32[2,1,8], index: 1, kind: input, shape index: {}]
  %s2 = inlined_call_operand.vmem [shape: bf16[32,32], index: 2, kind: input, shape index: {}]
  %s3 = inlined_call_operand.vmem [shape: bf16[32,32], index: 3, kind: input, shape index: {}]
  %s4 = inlined_call_operand.vmem [shape: bf16[32,32], index: 4, kind: input, shape index: {}]
  %s5 = inlined_call_operand.vmem [shape: bf16[32,32], index: 5, kind: input, shape index: {}]
  %s6 = inlined_call_operand.vmem [shape: bf16[32,128], index: 6, kind: input, shape index: {}]
  %s7 = inlined_call_operand.vmem [shape: bf16[128,32], index: 7, kind: input, shape index: {}]
  %s8 = inlined_call_operand.vmem [shape: bf16[1,32], index: 8, kind: input, shape index: {}]
  %s9 = inlined_call_operand.vmem [shape: bf16[1,32], index: 9, kind: input, shape index: {}]
  %s10 = inlined_call_operand.vmem [shape: bf16[1,32], index: 10, kind: input, shape index: {}]
  %s11 = inlined_call_operand.vmem [shape: bf16[2,8,32], index: 11, kind: output, shape index: {}]
  %s12 = sld [smem:[#allocation0]]
  $region77: #{multi_head_causal_lm_forward.2} parent=0
    _
  %s14 = ssub.s32 1, %s12
  %s15 = scalar_select 0, %s14, %s12
  loop: start=0, step=1, limit=4
  $region2: #{multi_head_causal_lm_forward.2} parent=0 // loop_pre_header
    _
  $region3: #{multi_head_causal_lm_forward.2} parent=0 // loop_header
    %s17 = sphi 0, %s21
    %p18 = scmp.ge.s32.totalorder %s17, 4
    %s27 = sphi 0, %s29
    %s30 = sphi 0, %s27
    %s31 = sphi 0, %s30
    %s47 = sphi 0, %s31
    %s53 = sphi 0, %s55
    %s56 = sphi 0, %s53
    %s57 = sphi 0, %s56
    %s73 = sphi 0, %s57
    %s77 = sphi 0, %s77
    %s79 = sphi 0, %s77
    %s80 = sphi 0, %s79
    %s94 = sphi 0, %s80
    %s98 = sphi 0, %s98
    %s100 = sphi 0, %s98
    %s101 = sphi 0, %s100
    %s115 = sphi 0, %s101
    %s119 = sphi 0, %s119
    %s121 = sphi 0, %s119
    %s122 = sphi 0, %s121
    %s136 = sphi 0, %s122
    %s140 = sphi 0, %s140
    %s142 = sphi 0, %s140
    %s143 = sphi 0, %s142
    %s157 = sphi 0, %s143
    %s161 = sphi 0, %s161
    %s163 = sphi 0, %s161
    %s164 = sphi 0, %s163
    %s178 = sphi 0, %s164
    %s182 = sphi 0, %s182
    %s184 = sphi 0, %s182
    %s185 = sphi 0, %s184
    %s199 = sphi 0, %s185
    %s203 = sphi 0, %s203
    %s205 = sphi 0, %s203
    %s206 = sphi 0, %s205
    %s220 = sphi 0, %s206
    %s224 = sphi 0, %s224
    %s226 = sphi 0, %s224
    %s227 = sphi 0, %s226
    %s241 = sphi 0, %s227
    %s245 = sphi 0, %s245
    %s247 = sphi 0, %s245
    %s248 = sphi 0, %s247
    %s262 = sphi 0, %s248
    %s268 = sphi 0, %s270
    %s271 = sphi 0, %s268
    %s272 = sphi 0, %s271
    %s288 = sphi 0, %s272
  $region4: #{multi_head_causal_lm_forward.2} parent=0 // loop_header_branch
    %20 = sbr.rel (%p18) target = $region8
  $region5: #{multi_head_causal_lm_forward.2} parent=0 // loop_body
    %s22 = ssub.s32 %s17, 1
    %s23 = ssub.s32 %s17, 2
    %s24 = sadd.s32 %s17, 1
    %s25 = ssub.s32 %s17, %s24
    %p26 = scmp.eq.s32.totalorder %s25, 0
    %s28 = sadd.s32 %s27, 1
    %s29 = scalar_select %p26, %s27, %s28
    %p32 = pneg %p26
    %p33 = scmp.eq.s32.totalorder %s17, 1
    %p34 = por %p32, %p33
    %p35 = scmp.ne.s32.totalorder %s27, %s30
    %p36 = scmp.eq.s32.totalorder %s17, 0
    %p37 = por %p35, %p36
    %p38 = scmp.ne.s32.totalorder %s27, %s30
    %p39 = scmp.eq.s32.totalorder %s22, 1
    %p40 = por %p38, %p39
    %p41 = scmp.ne.s32.totalorder %s30, %s31
    %p42 = scmp.eq.s32.totalorder %s22, 0
    %p43 = por %p41, %p42
    %p44 = scmp.ne.s32.totalorder %s30, %s31
    %p45 = scmp.eq.s32.totalorder %s23, 1
    %p46 = por %p44, %p45
    %p48 = scmp.ne.s32.totalorder %s31, %s47
    %p49 = scmp.eq.s32.totalorder %s23, 0
    %p50 = por %p48, %p49
    %s51 = ssub.s32 %s17, %s24
    %p52 = scmp.eq.s32.totalorder %s51, 0
    %s54 = sadd.s32 %s53, 1
    %s55 = scalar_select %p52, %s53, %s54
    %p58 = pneg %p52
    %p59 = scmp.eq.s32.totalorder %s17, 1
    %p60 = por %p58, %p59
    %p61 = scmp.ne.s32.totalorder %s53, %s56
    %p62 = scmp.eq.s32.totalorder %s17, 0
    %p63 = por %p61, %p62
    %p64 = scmp.ne.s32.totalorder %s53, %s56
    %p65 = scmp.eq.s32.totalorder %s22, 1
    %p66 = por %p64, %p65
    %p67 = scmp.ne.s32.totalorder %s56, %s57
    %p68 = scmp.eq.s32.totalorder %s22, 0
    %p69 = por %p67, %p68
    %p70 = scmp.ne.s32.totalorder %s56, %s57
    %p71 = scmp.eq.s32.totalorder %s23, 1
    %p72 = por %p70, %p71
    %p74 = scmp.ne.s32.totalorder %s57, %s73
    %p75 = scmp.eq.s32.totalorder %s23, 0
    %p76 = por %p74, %p75
    %s78 = sadd.s32 %s77, 1
    %p81 = scmp.eq.s32.totalorder %s17, 1
    %p82 = scmp.ne.s32.totalorder %s77, %s79
    %p83 = scmp.eq.s32.totalorder %s17, 0
    %p84 = por %p82, %p83
    %p85 = scmp.ne.s32.totalorder %s77, %s79
    %p86 = scmp.eq.s32.totalorder %s22, 1
    %p87 = por %p85, %p86
    %p88 = scmp.ne.s32.totalorder %s79, %s80
    %p89 = scmp.eq.s32.totalorder %s22, 0
    %p90 = por %p88, %p89
    %p91 = scmp.ne.s32.totalorder %s79, %s80
    %p92 = scmp.eq.s32.totalorder %s23, 1
    %p93 = por %p91, %p92
    %p95 = scmp.ne.s32.totalorder %s80, %s94
    %p96 = scmp.eq.s32.totalorder %s23, 0
    %p97 = por %p95, %p96
    %s99 = sadd.s32 %s98, 1
    %p102 = scmp.eq.s32.totalorder %s17, 1
    %p103 = scmp.ne.s32.totalorder %s98, %s100
    %p104 = scmp.eq.s32.totalorder %s17, 0
    %p105 = por %p103, %p104
    %p106 = scmp.ne.s32.totalorder %s98, %s100
    %p107 = scmp.eq.s32.totalorder %s22, 1
    %p108 = por %p106, %p107
    %p109 = scmp.ne.s32.totalorder %s100, %s101
    %p110 = scmp.eq.s32.totalorder %s22, 0
    %p111 = por %p109, %p110
    %p112 = scmp.ne.s32.totalorder %s100, %s101
    %p113 = scmp.eq.s32.totalorder %s23, 1
    %p114 = por %p112, %p113
    %p116 = scmp.ne.s32.totalorder %s101, %s115
    %p117 = scmp.eq.s32.totalorder %s23, 0
    %p118 = por %p116, %p117
    %s120 = sadd.s32 %s119, 1
    %p123 = scmp.eq.s32.totalorder %s17, 1
    %p124 = scmp.ne.s32.totalorder %s119, %s121
    %p125 = scmp.eq.s32.totalorder %s17, 0
    %p126 = por %p124, %p125
    %p127 = scmp.ne.s32.totalorder %s119, %s121
    %p128 = scmp.eq.s32.totalorder %s22, 1
    %p129 = por %p127, %p128
    %p130 = scmp.ne.s32.totalorder %s121, %s122
    %p131 = scmp.eq.s32.totalorder %s22, 0
    %p132 = por %p130, %p131
    %p133 = scmp.ne.s32.totalorder %s121, %s122
    %p134 = scmp.eq.s32.totalorder %s23, 1
    %p135 = por %p133, %p134
    %p137 = scmp.ne.s32.totalorder %s122, %s136
    %p138 = scmp.eq.s32.totalorder %s23, 0
    %p139 = por %p137, %p138
    %s141 = sadd.s32 %s140, 1
    %p144 = scmp.eq.s32.totalorder %s17, 1
    %p145 = scmp.ne.s32.totalorder %s140, %s142
    %p146 = scmp.eq.s32.totalorder %s17, 0
    %p147 = por %p145, %p146
    %p148 = scmp.ne.s32.totalorder %s140, %s142
    %p149 = scmp.eq.s32.totalorder %s22, 1
    %p150 = por %p148, %p149
    %p151 = scmp.ne.s32.totalorder %s142, %s143
    %p152 = scmp.eq.s32.totalorder %s22, 0
    %p153 = por %p151, %p152
    %p154 = scmp.ne.s32.totalorder %s142, %s143
    %p155 = scmp.eq.s32.totalorder %s23, 1
    %p156 = por %p154, %p155
    %p158 = scmp.ne.s32.totalorder %s143, %s157
    %p159 = scmp.eq.s32.totalorder %s23, 0
    %p160 = por %p158, %p159
    %s162 = sadd.s32 %s161, 1
    %p165 = scmp.eq.s32.totalorder %s17, 1
    %p166 = scmp.ne.s32.totalorder %s161, %s163
    %p167 = scmp.eq.s32.totalorder %s17, 0
    %p168 = por %p166, %p167
    %p169 = scmp.ne.s32.totalorder %s161, %s163
    %p170 = scmp.eq.s32.totalorder %s22, 1
    %p171 = por %p169, %p170
    %p172 = scmp.ne.s32.totalorder %s163, %s164
    %p173 = scmp.eq.s32.totalorder %s22, 0
    %p174 = por %p172, %p173
    %p175 = scmp.ne.s32.totalorder %s163, %s164
    %p176 = scmp.eq.s32.totalorder %s23, 1
    %p177 = por %p175, %p176
    %p179 = scmp.ne.s32.totalorder %s164, %s178
    %p180 = scmp.eq.s32.totalorder %s23, 0
    %p181 = por %p179, %p180
    %s183 = sadd.s32 %s182, 1
    %p186 = scmp.eq.s32.totalorder %s17, 1
    %p187 = scmp.ne.s32.totalorder %s182, %s184
    %p188 = scmp.eq.s32.totalorder %s17, 0
    %p189 = por %p187, %p188
    %p190 = scmp.ne.s32.totalorder %s182, %s184
    %p191 = scmp.eq.s32.totalorder %s22, 1
    %p192 = por %p190, %p191
    %p193 = scmp.ne.s32.totalorder %s184, %s185
    %p194 = scmp.eq.s32.totalorder %s22, 0
    %p195 = por %p193, %p194
    %p196 = scmp.ne.s32.totalorder %s184, %s185
    %p197 = scmp.eq.s32.totalorder %s23, 1
    %p198 = por %p196, %p197
    %p200 = scmp.ne.s32.totalorder %s185, %s199
    %p201 = scmp.eq.s32.totalorder %s23, 0
    %p202 = por %p200, %p201
    %s204 = sadd.s32 %s203, 1
    %p207 = scmp.eq.s32.totalorder %s17, 1
    %p208 = scmp.ne.s32.totalorder %s203, %s205
    %p209 = scmp.eq.s32.totalorder %s17, 0
    %p210 = por %p208, %p209
    %p211 = scmp.ne.s32.totalorder %s203, %s205
    %p212 = scmp.eq.s32.totalorder %s22, 1
    %p213 = por %p211, %p212
    %p214 = scmp.ne.s32.totalorder %s205, %s206
    %p215 = scmp.eq.s32.totalorder %s22, 0
    %p216 = por %p214, %p215
    %p217 = scmp.ne.s32.totalorder %s205, %s206
    %p218 = scmp.eq.s32.totalorder %s23, 1
    %p219 = por %p217, %p218
    %p221 = scmp.ne.s32.totalorder %s206, %s220
    %p222 = scmp.eq.s32.totalorder %s23, 0
    %p223 = por %p221, %p222
    %s225 = sadd.s32 %s224, 1
    %p228 = scmp.eq.s32.totalorder %s17, 1
    %p229 = scmp.ne.s32.totalorder %s224, %s226
    %p230 = scmp.eq.s32.totalorder %s17, 0
    %p231 = por %p229, %p230
    %p232 = scmp.ne.s32.totalorder %s224, %s226
    %p233 = scmp.eq.s32.totalorder %s22, 1
    %p234 = por %p232, %p233
    %p235 = scmp.ne.s32.totalorder %s226, %s227
    %p236 = scmp.eq.s32.totalorder %s22, 0
    %p237 = por %p235, %p236
    %p238 = scmp.ne.s32.totalorder %s226, %s227
    %p239 = scmp.eq.s32.totalorder %s23, 1
    %p240 = por %p238, %p239
    %p242 = scmp.ne.s32.totalorder %s227, %s241
    %p243 = scmp.eq.s32.totalorder %s23, 0
    %p244 = por %p242, %p243
    %s246 = sadd.s32 %s245, 1
    %p249 = scmp.eq.s32.totalorder %s17, 1
    %p250 = scmp.ne.s32.totalorder %s245, %s247
    %p251 = scmp.eq.s32.totalorder %s17, 0
    %p252 = por %p250, %p251
    %p253 = scmp.ne.s32.totalorder %s245, %s247
    %p254 = scmp.eq.s32.totalorder %s22, 1
    %p255 = por %p253, %p254
    %p256 = scmp.ne.s32.totalorder %s247, %s248
    %p257 = scmp.eq.s32.totalorder %s22, 0
    %p258 = por %p256, %p257
    %p259 = scmp.ne.s32.totalorder %s247, %s248
    %p260 = scmp.eq.s32.totalorder %s23, 1
    %p261 = por %p259, %p260
    %p263 = scmp.ne.s32.totalorder %s248, %s262
    %p264 = scmp.eq.s32.totalorder %s23, 0
    %p265 = por %p263, %p264
    %s266 = ssub.s32 %s17, %s24
    %p267 = scmp.eq.s32.totalorder %s266, 0
    %s269 = sadd.s32 %s268, 1
    %s270 = scalar_select %p267, %s268, %s269
    %p273 = pneg %p267
    %p274 = scmp.eq.s32.totalorder %s17, 1
    %p275 = por %p273, %p274
    %p276 = scmp.ne.s32.totalorder %s268, %s271
    %p277 = scmp.eq.s32.totalorder %s17, 0
    %p278 = por %p276, %p277
    %p279 = scmp.ne.s32.totalorder %s268, %s271
    %p280 = scmp.eq.s32.totalorder %s22, 1
    %p281 = por %p279, %p280
    %p282 = scmp.ne.s32.totalorder %s271, %s272
    %p283 = scmp.eq.s32.totalorder %s22, 0
    %p284 = por %p282, %p283
    %p285 = scmp.ne.s32.totalorder %s271, %s272
    %p286 = scmp.eq.s32.totalorder %s23, 1
    %p287 = por %p285, %p286
    %p289 = scmp.ne.s32.totalorder %s272, %s288
    %p290 = scmp.eq.s32.totalorder %s23, 0
    %p291 = por %p289, %p290
    %p292 = scmp.le.s32.totalorder 1, %s17
    %p293 = scmp.lt.s32.totalorder %s17, 3
    %p294 = pnand %p292, %p293
    %p295 = pneg %p294
    // Predicated region
    $region9: #{multi_head_causal_lm_forward.2} parent=5 // pred_check
      _
    $region10: #{multi_head_causal_lm_forward.2} parent=5 // pred_check_branch
      %297 = sbr.rel (%p294) target = $region12
    $region11: #{multi_head_causal_lm_forward.2} parent=5 // pred_region
      %s298 = ssub.s32 %s17, 1
      // Predicated region
      $region13: #{multi_head_causal_lm_forward.2} parent=11 // pred_check
        %p299 = pneg %p90
      $region14: #{multi_head_causal_lm_forward.2} parent=11 // pred_check_branch
        %301 = sbr.rel (%p299) target = $region16
      $region15: #{multi_head_causal_lm_forward.2} parent=11 // pred_region
        _
      $region16: #{multi_head_causal_lm_forward.2} parent=11 // pred_fallthru
        _
      // Predicated region
      $region17: #{multi_head_causal_lm_forward.2} parent=11 // pred_check
        %p302 = pneg %p111
      $region18: #{multi_head_causal_lm_forward.2} parent=11 // pred_check_branch
        %304 = sbr.rel (%p302) target = $region20
      $region19: #{multi_head_causal_lm_forward.2} parent=11 // pred_region
        _
      $region20: #{multi_head_causal_lm_forward.2} parent=11 // pred_fallthru
        _
      // Predicated region
      $region21: #{multi_head_causal_lm_forward.2} parent=11 // pred_check
        %p305 = pneg %p132
      $region22: #{multi_head_causal_lm_forward.2} parent=11 // pred_check_branch
        %307 = sbr.rel (%p305) target = $region24
      $region23: #{multi_head_causal_lm_forward.2} parent=11 // pred_region
        _
      $region24: #{multi_head_causal_lm_forward.2} parent=11 // pred_fallthru
        _
      // Predicated region
      $region25: #{multi_head_causal_lm_forward.2} parent=11 // pred_check
        %p308 = pneg %p153
      $region26: #{multi_head_causal_lm_forward.2} parent=11 // pred_check_branch
        %310 = sbr.rel (%p308) target = $region28
      $region27: #{multi_head_causal_lm_forward.2} parent=11 // pred_region
        _
      $region28: #{multi_head_causal_lm_forward.2} parent=11 // pred_fallthru
        _
      // Predicated region
      $region29: #{multi_head_causal_lm_forward.2} parent=11 // pred_check
        %p311 = pneg %p174
      $region30: #{multi_head_causal_lm_forward.2} parent=11 // pred_check_branch
        %313 = sbr.rel (%p311) target = $region32
      $region31: #{multi_head_causal_lm_forward.2} parent=11 // pred_region
        _
      $region32: #{multi_head_causal_lm_forward.2} parent=11 // pred_fallthru
        _
      // Predicated region
      $region33: #{multi_head_causal_lm_forward.2} parent=11 // pred_check
        %p314 = pneg %p195
      $region34: #{multi_head_causal_lm_forward.2} parent=11 // pred_check_branch
        %316 = sbr.rel (%p314) target = $region36
      $region35: #{multi_head_causal_lm_forward.2} parent=11 // pred_region
        _
      $region36: #{multi_head_causal_lm_forward.2} parent=11 // pred_fallthru
        _
      // Predicated region
      $region37: #{multi_head_causal_lm_forward.2} parent=11 // pred_check
        %p317 = pneg %p216
      $region38: #{multi_head_causal_lm_forward.2} parent=11 // pred_check_branch
        %319 = sbr.rel (%p317) target = $region40
      $region39: #{multi_head_causal_lm_forward.2} parent=11 // pred_region
        _
      $region40: #{multi_head_causal_lm_forward.2} parent=11 // pred_fallthru
        _
      // Predicated region
      $region41: #{multi_head_causal_lm_forward.2} parent=11 // pred_check
        %p320 = pneg %p237
      $region42: #{multi_head_causal_lm_forward.2} parent=11 // pred_check_branch
        %322 = sbr.rel (%p320) target = $region44
      $region43: #{multi_head_causal_lm_forward.2} parent=11 // pred_region
        _
      $region44: #{multi_head_causal_lm_forward.2} parent=11 // pred_fallthru
        _
      // Predicated region
      $region45: #{multi_head_causal_lm_forward.2} parent=11 // pred_check
        %p323 = pneg %p258
      $region46: #{multi_head_causal_lm_forward.2} parent=11 // pred_check_branch
        %325 = sbr.rel (%p323) target = $region48
      $region47: #{multi_head_causal_lm_forward.2} parent=11 // pred_region
        _
      $region48: #{multi_head_causal_lm_forward.2} parent=11 // pred_fallthru
        _
    $region12: #{multi_head_causal_lm_forward.2} parent=5 // pred_fallthru
      _
    %p326 = scmp.lt.s32.totalorder %s17, 2
    // Predicated region
    $region49: #{multi_head_causal_lm_forward.2} parent=5 // pred_check
      %p327 = pneg %p326
    $region50: #{multi_head_causal_lm_forward.2} parent=5 // pred_check_branch
      %329 = sbr.rel (%p327) target = $region52
    $region51: #{multi_head_causal_lm_forward.2} parent=5 // pred_region
      // Predicated region
      $region53: #{multi_head_causal_lm_forward.2} parent=51 // pred_check
        %p330 = pneg %p37
      $region54: #{multi_head_causal_lm_forward.2} parent=51 // pred_check_branch
        %332 = sbr.rel (%p330) target = $region56
      $region55: #{multi_head_causal_lm_forward.2} parent=51 // pred_region
        %p333 = scmp.lt.s32.totalorder %s17, 1
        %s334 = scalar_select %p333, %s17, 1
        %s335 = smul.addr %s334, 4
        %s336 = scalar_lea.vmem %s0, %s335
      $region56: #{multi_head_causal_lm_forward.2} parent=51 // pred_fallthru
        _
      // Predicated region
      $region57: #{multi_head_causal_lm_forward.2} parent=51 // pred_check
        %p337 = pneg %p63
      $region58: #{multi_head_causal_lm_forward.2} parent=51 // pred_check_branch
        %339 = sbr.rel (%p337) target = $region60
      $region59: #{multi_head_causal_lm_forward.2} parent=51 // pred_region
        %p340 = scmp.lt.s32.totalorder %s17, 1
        %s341 = scalar_select %p340, %s17, 1
        %s342 = scalar_lea.vmem %s1, %s341
      $region60: #{multi_head_causal_lm_forward.2} parent=51 // pred_fallthru
        _
    $region52: #{multi_head_causal_lm_forward.2} parent=5 // pred_fallthru
      _
    %p343 = scmp.le.s32.totalorder 1, %s17
    %p344 = scmp.lt.s32.totalorder %s17, 3
    %p345 = pnand %p343, %p344
    %p346 = pneg %p345
    // Predicated region
    $region61: #{multi_head_causal_lm_forward.2} parent=5 // pred_check
      _
    $region62: #{multi_head_causal_lm_forward.2} parent=5 // pred_check_branch
      %348 = sbr.rel (%p345) target = $region64
    $region63: #{multi_head_causal_lm_forward.2} parent=5 // pred_region
      %s349 = ssub.s32 %s17, 1
      %p350 = scmp.lt.s32.totalorder %s22, 1
      %s351 = scalar_select %p350, %s22, 1
      %s352 = smul.addr %s351, 4
      %s353 = scalar_lea.vmem %s0, %s352
      %p354 = pneg %p43
      %p355 = pneg %p40
      %p356 = scmp.lt.s32.totalorder %s22, 1
      %s357 = scalar_select %p356, %s22, 1
      %s358 = scalar_lea.vmem %s1, %s357
      %p359 = pneg %p69
      %p360 = pneg %p66
      %p361 = pneg %p90
      %p362 = pneg %p87
      %p363 = pneg %p111
      %p364 = pneg %p108
      %p365 = pneg %p132
      %p366 = pneg %p129
      %p367 = pneg %p153
      %p368 = pneg %p150
      %p369 = pneg %p174
      %p370 = pneg %p171
      %p371 = pneg %p195
      %p372 = pneg %p192
      %p373 = pneg %p216
      %p374 = pneg %p213
      %p375 = pneg %p237
      %p376 = pneg %p234
      %p377 = pneg %p258
      %p378 = pneg %p255
      %p379 = pneg %p284
      %p380 = pneg %p281
      %p381 = scmp.lt.s32.totalorder %s22, 1
      %s382 = scalar_select %p381, %s22, 1
      %s383 = smul.addr %s382, 4
      %s384 = scalar_lea.vmem %s11, %s383
      %p385 = scmp.lt.s32.totalorder %s22, 1
      %s386 = scalar_select %p385, %s22, 1
      %s387 = smul.addr %s386, 4
      %s388 = scalar_lea.vmem %s0, %s387
      %p389 = scmp.lt.s32.totalorder %s22, 1
      %s390 = scalar_select %p389, %s22, 1
      %s391 = scalar_lea.vmem %s1, %s390
      %p392 = scmp.lt.s32.totalorder %s22, 1
      %s393 = scalar_select %p392, %s22, 1
      %s394 = smul.addr %s393, 4
      %s395 = scalar_lea.vmem %s11, %s394
      %v396 = vld [vmem:[%s388] sm:$0xf]
      %v397 = vld [vmem:[%s391] sm:$0x1]
      %v398 = vld [vmem:[%s8] sm:$0x1]
      %v399 = vunpack.c.l.bf16 %v396
      %v400 = vmul.f32 %v399, %v399
      %vm401 = vcmask 261120
      %v402 = vsel %vm401, %v400, 0.0
      %403 = vadd.xlane.f32.xlu0 %v402
      %v404 = vpop.xlane.xlu0 %403
      %v405 = vrcp.pop 32.0
      %v406 = vmul.f32 32.0, %v405
      %v407 = vsub.f32 1.0, %v406
      %v408 = vmul.f32 %v405, %v407
      %v409 = vadd.f32 %v405, %v408
      %vm410 = vweird.f32 %v405
      %v411 = vsel %vm410, %v405, %v409
      %v412 = vmul.f32 %v404, %v411
      %v413 = vadd.f32 %v412, 1e-06
      %v414 = vrsqrt.pop %v413
      %v415 = vmul.f32 %v414, %v413
      %v416 = vmul.f32 %v415, %v414
      %v417 = vmul.f32 0.5, %v416
      %v418 = vsub.f32 1.5, %v417
      %v419 = vmul.f32 %v414, %v418
      %vm420 = vweird.f32 %v413
      %vm421 = vweird.f32 %v414
      %vm422 = vmor %vm420, %vm421
      %v423 = vsel %vm422, %v414, %v419
      %v424 = vmul.f32 %v399, %v423
      %v425 = vunpack.c.l.bf16 %v398
      %v426 = vperm.slane %v425, 0
      %v427 = vmul.f32 %v424, %v426
      %v428 = vpack.c.bf16 %v427, %v427
      %v429 = vld [vmem:[%s2] sm:$0xf]
      %v430 = vld [vmem:[%s2 + $0x4] sm:$0xf]
      %v431 = vld [vmem:[%s2 + $0x8] sm:$0xf]
      %v432 = vld [vmem:[%s2 + $0xc] sm:$0xf]
      %v433 = vunpack.c.l.bf16 %v428
      %v434 = vunpack.c.l.bf16 %v429
      %v435 = vunpack.c.l.bf16 %v430
      %v436 = vunpack.c.l.bf16 %v431
      %v437 = vunpack.c.l.bf16 %v432
      %v439 = vsel %vm401, %v433, 0
      %441 = vmatpush.msra.mxu0 0.0
      %442 = vmatpush.msra.mxu0 0.0
      %443 = vmatpush.msra.mxu0 0.0
      %444 = vmatpush.msra.mxu0 0.0
      %445 = vmatpush.msra.mxu0 0.0
      %446 = vmatpush.msra.mxu0 0.0
      %447 = vmatpush.msra.mxu0 0.0
      %448 = vmatpush.msra.mxu0 0.0
      %449 = vmatpush.msra.mxu0 0.0
      %450 = vmatpush.msra.mxu0 0.0
      %451 = vmatpush.msra.mxu0 0.0
      %452 = vmatpush.msra.mxu0 0.0
      %453 = vmatpush.msra.mxu0 %v437
      %454 = vmatpush.msra.mxu0 %v436
      %455 = vmatpush.msra.mxu0 %v435
      %456 = vmatpush.msra.mxu0 %v434
      %457 = vmatmul.f32.gmra.mxu0 %v439
      %v458 = vpop.f32.mrf.mxu0
      %v459 = vadd.f32 0.0, %v458
      %460 = vdwg.mxu0
      %v461 = vld [vmem:[%s3] sm:$0xf]
      %v462 = vld [vmem:[%s3 + $0x4] sm:$0xf]
      %v463 = vld [vmem:[%s3 + $0x8] sm:$0xf]
      %v464 = vld [vmem:[%s3 + $0xc] sm:$0xf]
      %v465 = vunpack.c.l.bf16 %v461
      %v466 = vunpack.c.l.bf16 %v462
      %v467 = vunpack.c.l.bf16 %v463
      %v468 = vunpack.c.l.bf16 %v464
      %469 = vmatpush.msra.mxu0 0.0
      %470 = vmatpush.msra.mxu0 0.0
      %471 = vmatpush.msra.mxu0 0.0
      %472 = vmatpush.msra.mxu0 0.0
      %473 = vmatpush.msra.mxu0 0.0
      %474 = vmatpush.msra.mxu0 0.0
      %475 = vmatpush.msra.mxu0 0.0
      %476 = vmatpush.msra.mxu0 0.0
      %477 = vmatpush.msra.mxu0 0.0
      %478 = vmatpush.msra.mxu0 0.0
      %479 = vmatpush.msra.mxu0 0.0
      %480 = vmatpush.msra.mxu0 0.0
      %481 = vmatpush.msra.mxu0 %v468
      %482 = vmatpush.msra.mxu0 %v467
      %483 = vmatpush.msra.mxu0 %v466
      %484 = vmatpush.msra.mxu0 %v465
      %485 = vmatmul.f32.gmra.mxu0 %v439
      %v486 = vpop.f32.mrf.mxu0
      %v487 = vadd.f32 0.0, %v486
      %488 = vdwg.mxu0
      %v489 = vld [vmem:[%s4] sm:$0xf]
      %v490 = vld [vmem:[%s4 + $0x4] sm:$0xf]
      %v491 = vld [vmem:[%s4 + $0x8] sm:$0xf]
      %v492 = vld [vmem:[%s4 + $0xc] sm:$0xf]
      %v493 = vunpack.c.l.bf16 %v489
      %v494 = vunpack.c.l.bf16 %v490
      %v495 = vunpack.c.l.bf16 %v491
      %v496 = vunpack.c.l.bf16 %v492
      %497 = vmatpush.msra.mxu0 0.0
      %498 = vmatpush.msra.mxu0 0.0
      %499 = vmatpush.msra.mxu0 0.0
      %500 = vmatpush.msra.mxu0 0.0
      %501 = vmatpush.msra.mxu0 0.0
      %502 = vmatpush.msra.mxu0 0.0
      %503 = vmatpush.msra.mxu0 0.0
      %504 = vmatpush.msra.mxu0 0.0
      %505 = vmatpush.msra.mxu0 0.0
      %506 = vmatpush.msra.mxu0 0.0
      %507 = vmatpush.msra.mxu0 0.0
      %508 = vmatpush.msra.mxu0 0.0
      %509 = vmatpush.msra.mxu0 %v496
      %510 = vmatpush.msra.mxu0 %v495
      %511 = vmatpush.msra.mxu0 %v494
      %512 = vmatpush.msra.mxu0 %v493
      %513 = vmatmul.f32.gmra.mxu0 %v439
      %v514 = vpop.f32.mrf.mxu0
      %v515 = vadd.f32 0.0, %v514
      %516 = vdwg.mxu0
      %v517 = vlaneseq
      %v518 = vshrl.u32 %v517, 7
      %v519 = vlaneseq
      %v520 = vand.u32 %v519, 127
      %v522 = vsel %vm401, %v459, 0
      %v525 = vsel %vm401, %v487, 0
      %527 = vmatpush.xpose.msra.mxu0 0.0
      %528 = vmatpush.xpose.msra.mxu0 0.0
      %529 = vmatpush.xpose.msra.mxu0 0.0
      %530 = vmatpush.xpose.msra.mxu0 0.0
      %531 = vmatpush.xpose.msra.mxu0 0.0
      %532 = vmatpush.xpose.msra.mxu0 0.0
      %533 = vmatpush.xpose.msra.mxu0 0.0
      %534 = vmatpush.xpose.msra.mxu0 0.0
      %535 = vmatpush.xpose.msra.mxu0 0.0
      %536 = vmatpush.xpose.msra.mxu0 0.0
      %537 = vmatpush.xpose.msra.mxu0 0.0
      %538 = vmatpush.xpose.msra.mxu0 0.0
      %539 = vmatpush.xpose.msra.mxu0 0.0
      %540 = vmatpush.xpose.msra.mxu0 0.0
      %541 = vmatpush.xpose.msra.mxu0 0.0
      %542 = vmatpush.xpose.msra.mxu0 %v525
      %543 = vmatmul.f32.gmra.mxu0 %v522
      %v544 = vpop.f32.mrf.mxu0
      %v545 = vadd.f32 0.0, %v544
      %546 = vdwg.mxu0
      %v547 = vmul.f32 %v545, 0.17677669
      %vm548 = vcmp.le.s32.totalorder %v520, %v518
      %vm549 = vcmp.gt.s32.totalorder %v397, 0
      %v550 = vsel %vm549, 1, 0
      %v551 = vperm.slane %v550, 0
      %vm552 = vcmp.eq.s32.totalorder %v551, 1
      %vm553 = vmand %vm548, %vm552
      %v554 = vsel %vm553, %v547, -1e+30
      %vm555 = vcmask 64512
      %v556 = vsel %vm555, %v554, -inf
      %557 = vmax.xlane.f32.xlu0 %v556
      %v558 = vpop.xlane.xlu0 %557
      %v559 = vsub.f32 -inf, %v558
      %v560 = vmul.f32 %v559, 1.442695
      %v561 = vpow.pop %v560
      %v562 = vsub.f32 %v554, %v558
      %v563 = vmul.f32 %v562, 1.442695
      %v564 = vpow.pop %v563
      %v565 = vmul.f32 %v561, 0.0
      %v566 = vsel %vm555, %v564, 0.0
      %567 = vadd.xlane.f32.xlu0 %v566
      %v568 = vpop.xlane.xlu0 %567
      %v569 = vadd.f32 %v565, %v568
      %v571 = vsel %vm555, %v564, 0
      %573 = vmatpush.msra.mxu0 0.0
      %574 = vmatpush.msra.mxu0 0.0
      %575 = vmatpush.msra.mxu0 0.0
      %576 = vmatpush.msra.mxu0 0.0
      %577 = vmatpush.msra.mxu0 0.0
      %578 = vmatpush.msra.mxu0 0.0
      %579 = vmatpush.msra.mxu0 0.0
      %580 = vmatpush.msra.mxu0 0.0
      %581 = vmatpush.msra.mxu0 0.0
      %582 = vmatpush.msra.mxu0 0.0
      %583 = vmatpush.msra.mxu0 0.0
      %584 = vmatpush.msra.mxu0 0.0
      %585 = vmatpush.msra.mxu0 0.0
      %586 = vmatpush.msra.mxu0 0.0
      %587 = vmatpush.msra.mxu0 0.0
      %588 = vmatpush.msra.mxu0 %v515
      %589 = vmatmul.f32.gmra.mxu0 %v571
      %v590 = vpop.f32.mrf.mxu0
      %v591 = vadd.f32 0.0, %v590
      %592 = vdwg.mxu0
      %v593 = vadd.f32 %v565, %v591
      %v594 = vrcp.pop %v569
      %v595 = vmul.f32 %v569, %v594
      %v596 = vsub.f32 1.0, %v595
      %v597 = vmul.f32 %v594, %v596
      %v598 = vadd.f32 %v594, %v597
      %vm599 = vweird.f32 %v569
      %vm600 = vweird.f32 %v594
      %vm601 = vmor %vm599, %vm600
      %v602 = vsel %vm601, %v594, %v598
      %v603 = vand.u32 2147483647, %v569
      %vm604 = vcmp.eq.f32.partialorder %v603, 8.507059e+37
      %v605 = vand.u32 %v569, 2147483648
      %v606 = vor.u32 1.1754944e-38, %v605
      %v607 = vsel %vm604, %v606, %v602
      %v608 = vmul.f32 %v593, %v607
      %v609 = vpack.c.bf16 %v608, %v608
      %v610 = vld [vmem:[%s5] sm:$0xf]
      %v611 = vld [vmem:[%s5 + $0x4] sm:$0xf]
      %v612 = vld [vmem:[%s5 + $0x8] sm:$0xf]
      %v613 = vld [vmem:[%s5 + $0xc] sm:$0xf]
      %v614 = vunpack.c.l.bf16 %v609
      %v615 = vunpack.c.l.bf16 %v610
      %v616 = vunpack.c.l.bf16 %v611
      %v617 = vunpack.c.l.bf16 %v612
      %v618 = vunpack.c.l.bf16 %v613
      %v620 = vsel %vm401, %v614, 0
      %622 = vmatpush.msra.mxu0 0.0
      %623 = vmatpush.msra.mxu0 0.0
      %624 = vmatpush.msra.mxu0 0.0
      %625 = vmatpush.msra.mxu0 0.0
      %626 = vmatpush.msra.mxu0 0.0
      %627 = vmatpush.msra.mxu0 0.0
      %628 = vmatpush.msra.mxu0 0.0
      %629 = vmatpush.msra.mxu0 0.0
      %630 = vmatpush.msra.mxu0 0.0
      %631 = vmatpush.msra.mxu0 0.0
      %632 = vmatpush.msra.mxu0 0.0
      %633 = vmatpush.msra.mxu0 0.0
      %634 = vmatpush.msra.mxu0 %v618
      %635 = vmatpush.msra.mxu0 %v617
      %636 = vmatpush.msra.mxu0 %v616
      %637 = vmatpush.msra.mxu0 %v615
      %638 = vmatmul.f32.gmra.mxu0 %v620
      %v639 = vpop.f32.mrf.mxu0
      %v640 = vadd.f32 0.0, %v639
      %641 = vdwg.mxu0
      %v642 = vadd.f32 %v399, %v640
      %v643 = vpack.c.bf16 %v642, %v642
      %v644 = vld [vmem:[%s9] sm:$0x1]
      %v645 = vunpack.c.l.bf16 %v643
      %v646 = vmul.f32 %v645, %v645
      %v647 = vsel %vm401, %v646, 0.0
      %648 = vadd.xlane.f32.xlu0 %v647
      %v649 = vpop.xlane.xlu0 %648
      %v650 = vmul.f32 %v649, %v411
      %v651 = vadd.f32 %v650, 1e-06
      %v652 = vrsqrt.pop %v651
      %v653 = vmul.f32 %v652, %v651
      %v654 = vmul.f32 %v653, %v652
      %v655 = vmul.f32 0.5, %v654
      %v656 = vsub.f32 1.5, %v655
      %v657 = vmul.f32 %v652, %v656
      %vm658 = vweird.f32 %v651
      %vm659 = vweird.f32 %v652
      %vm660 = vmor %vm658, %vm659
      %v661 = vsel %vm660, %v652, %v657
      %v662 = vmul.f32 %v645, %v661
      %v663 = vunpack.c.l.bf16 %v644
      %v664 = vperm.slane %v663, 0
      %v665 = vmul.f32 %v662, %v664
      %v666 = vpack.c.bf16 %v665, %v665
      %v667 = vld [vmem:[%s6] sm:$0xf]
      %v668 = vld [vmem:[%s6 + $0x4] sm:$0xf]
      %v669 = vld [vmem:[%s6 + $0x8] sm:$0xf]
      %v670 = vld [vmem:[%s6 + $0xc] sm:$0xf]
      %v671 = vunpack.c.l.bf16 %v666
      %v672 = vunpack.c.l.bf16 %v667
      %v673 = vunpack.c.l.bf16 %v668
      %v674 = vunpack.c.l.bf16 %v669
      %v675 = vunpack.c.l.bf16 %v670
      %v677 = vsel %vm401, %v671, 0
      %679 = vmatpush.msra.mxu0 0.0
      %680 = vmatpush.msra.mxu0 0.0
      %681 = vmatpush.msra.mxu0 0.0
      %682 = vmatpush.msra.mxu0 0.0
      %683 = vmatpush.msra.mxu0 0.0
      %684 = vmatpush.msra.mxu0 0.0
      %685 = vmatpush.msra.mxu0 0.0
      %686 = vmatpush.msra.mxu0 0.0
      %687 = vmatpush.msra.mxu0 0.0
      %688 = vmatpush.msra.mxu0 0.0
      %689 = vmatpush.msra.mxu0 0.0
      %690 = vmatpush.msra.mxu0 0.0
      %691 = vmatpush.msra.mxu0 %v675
      %692 = vmatpush.msra.mxu0 %v674
      %693 = vmatpush.msra.mxu0 %v673
      %694 = vmatpush.msra.mxu0 %v672
      %695 = vmatmul.f32.gmra.mxu0 %v677
      %v696 = vpop.f32.mrf.mxu0
      %v697 = vadd.f32 0.0, %v696
      %698 = vdwg.mxu0
      %v699 = vmul.f32 %v697, %v697
      %v700 = vmul.f32 %v697, %v699
      %v701 = vmul.f32 %v700, 0.044715
      %v702 = vadd.f32 %v697, %v701
      %v703 = vmul.f32 %v702, 0.7978846
      %v704 = vtanh.pop %v703
      %v705 = vadd.f32 %v704, 1.0
      %v706 = vmul.f32 %v705, 0.5
      %v707 = vmul.f32 %v697, %v706
      %v708 = vpack.c.bf16 %v707, %v707
      %v709 = vld [vmem:[%s7] sm:$0xf]
      %v710 = vld [vmem:[%s7 + $0x4] sm:$0xf]
      %v711 = vld [vmem:[%s7 + $0x8] sm:$0xf]
      %v712 = vld [vmem:[%s7 + $0xc] sm:$0xf]
      %v713 = vld [vmem:[%s7 + $0x10] sm:$0xf]
      %v714 = vld [vmem:[%s7 + $0x14] sm:$0xf]
      %v715 = vld [vmem:[%s7 + $0x18] sm:$0xf]
      %v716 = vld [vmem:[%s7 + $0x1c] sm:$0xf]
      %v717 = vld [vmem:[%s7 + $0x20] sm:$0xf]
      %v718 = vld [vmem:[%s7 + $0x24] sm:$0xf]
      %v719 = vld [vmem:[%s7 + $0x28] sm:$0xf]
      %v720 = vld [vmem:[%s7 + $0x2c] sm:$0xf]
      %v721 = vld [vmem:[%s7 + $0x30] sm:$0xf]
      %v722 = vld [vmem:[%s7 + $0x34] sm:$0xf]
      %v723 = vld [vmem:[%s7 + $0x38] sm:$0xf]
      %v724 = vld [vmem:[%s7 + $0x3c] sm:$0xf]
      %v725 = vunpack.c.l.bf16 %v708
      %v726 = vunpack.c.l.bf16 %v709
      %v727 = vunpack.c.l.bf16 %v710
      %v728 = vunpack.c.l.bf16 %v711
      %v729 = vunpack.c.l.bf16 %v712
      %v730 = vunpack.c.l.bf16 %v713
      %v731 = vunpack.c.l.bf16 %v714
      %v732 = vunpack.c.l.bf16 %v715
      %v733 = vunpack.c.l.bf16 %v716
      %v734 = vunpack.c.l.bf16 %v717
      %v735 = vunpack.c.l.bf16 %v718
      %v736 = vunpack.c.l.bf16 %v719
      %v737 = vunpack.c.l.bf16 %v720
      %v738 = vunpack.c.l.bf16 %v721
      %v739 = vunpack.c.l.bf16 %v722
      %v740 = vunpack.c.l.bf16 %v723
      %v741 = vunpack.c.l.bf16 %v724
      %742 = vmatpush.msra.mxu0 %v741
      %743 = vmatpush.msra.mxu0 %v740
      %744 = vmatpush.msra.mxu0 %v739
      %745 = vmatpush.msra.mxu0 %v738
      %746 = vmatpush.msra.mxu0 %v737
      %747 = vmatpush.msra.mxu0 %v736
      %748 = vmatpush.msra.mxu0 %v735
      %749 = vmatpush.msra.mxu0 %v734
      %750 = vmatpush.msra.mxu0 %v733
      %751 = vmatpush.msra.mxu0 %v732
      %752 = vmatpush.msra.mxu0 %v731
      %753 = vmatpush.msra.mxu0 %v730
      %754 = vmatpush.msra.mxu0 %v729
      %755 = vmatpush.msra.mxu0 %v728
      %756 = vmatpush.msra.mxu0 %v727
      %757 = vmatpush.msra.mxu0 %v726
      %758 = vmatmul.f32.gmra.mxu0 %v725
      %v759 = vpop.f32.mrf.mxu0
      %v760 = vadd.f32 0.0, %v759
      %761 = vdwg.mxu0
      %v762 = vadd.f32 %v645, %v760
      %v763 = vpack.c.bf16 %v762, %v762
      %v764 = vld [vmem:[%s10] sm:$0x1]
      %v765 = vunpack.c.l.bf16 %v763
      %v766 = vmul.f32 %v765, %v765
      %v767 = vsel %vm401, %v766, 0.0
      %768 = vadd.xlane.f32.xlu0 %v767
      %v769 = vpop.xlane.xlu0 %768
      %v770 = vmul.f32 %v769, %v411
      %v771 = vadd.f32 %v770, 1e-06
      %v772 = vrsqrt.pop %v771
      %v773 = vmul.f32 %v772, %v771
      %v774 = vmul.f32 %v773, %v772
      %v775 = vmul.f32 0.5, %v774
      %v776 = vsub.f32 1.5, %v775
      %v777 = vmul.f32 %v772, %v776
      %vm778 = vweird.f32 %v771
      %vm779 = vweird.f32 %v772
      %vm780 = vmor %vm778, %vm779
      %v781 = vsel %vm780, %v772, %v777
      %v782 = vmul.f32 %v765, %v781
      %v783 = vunpack.c.l.bf16 %v764
      %v784 = vperm.slane %v783, 0
      %v785 = vmul.f32 %v782, %v784
      %v786 = vpack.c.bf16 %v785, %v785
      %vm787 = vcmask 257024
      %788 = vst.msk [vmem:[%s395] sm:$0xf] %vm787, %v786
      %p789 = scmp.lt.s32.totalorder %s22, 1
      %s790 = scalar_select %p789, %s22, 1
      %s791 = smul.addr %s790, 4
      %s792 = scalar_lea.vmem %s11, %s791
      // Predicated region
      $region65: #{multi_head_causal_lm_forward.2} parent=63 // pred_check
        %p793 = pneg %p281
      $region66: #{multi_head_causal_lm_forward.2} parent=63 // pred_check_branch
        %795 = sbr.rel (%p793) target = $region68
      $region67: #{multi_head_causal_lm_forward.2} parent=63 // pred_region
        _
      $region68: #{multi_head_causal_lm_forward.2} parent=63 // pred_fallthru
        _
    $region64: #{multi_head_causal_lm_forward.2} parent=5 // pred_fallthru
      _
    %p796 = scmp.le.s32.totalorder 2, %s17
    // Predicated region
    $region69: #{multi_head_causal_lm_forward.2} parent=5 // pred_check
      %p797 = pneg %p796
    $region70: #{multi_head_causal_lm_forward.2} parent=5 // pred_check_branch
      %799 = sbr.rel (%p797) target = $region72
    $region71: #{multi_head_causal_lm_forward.2} parent=5 // pred_region
      %s800 = ssub.s32 %s17, 2
      // Predicated region
      $region73: #{multi_head_causal_lm_forward.2} parent=71 // pred_check
        %p801 = pneg %p287
      $region74: #{multi_head_causal_lm_forward.2} parent=71 // pred_check_branch
        %803 = sbr.rel (%p801) target = $region76
      $region75: #{multi_head_causal_lm_forward.2} parent=71 // pred_region
        %p804 = scmp.lt.s32.totalorder %s23, 1
        %s805 = scalar_select %p804, %s23, 1
        %s806 = smul.addr %s805, 4
        %s807 = scalar_lea.vmem %s11, %s806
      $region76: #{multi_head_causal_lm_forward.2} parent=71 // pred_fallthru
        _
    $region72: #{multi_head_causal_lm_forward.2} parent=5 // pred_fallthru
      _
  $region6: #{multi_head_causal_lm_forward.2} parent=0 // loop_footer
    %s21 = sadd.s32 1, %s17
  $region7: #{multi_head_causal_lm_forward.2} parent=0 // loop_footer_branch
    %16 = sbr.rel target = $region3
  $region8: #{multi_head_causal_lm_forward.2} parent=0 // loop_exit
    _

</llo_original>
